<compile_context>
chip_gen: v7x
topology: tpu7x:2x2x1
jax: 0.10.0
libtpu: 0.0.40
codegen_flags: <defaults>
</compile_context>

<pallas_src>
import functools

import jax
import jax.numpy as jnp
from jax.experimental import pallas as pl
from jax.experimental.pallas import tpu as pltpu

BN_EPS = 1e-5
LEAKY_SLOPE = 0.01
_LANE = 128


def _physical_vmem_bytes():
    try:
        return int(pltpu.get_tpu_info().vmem_capacity_bytes)
    except Exception:                      # query unavailable -> conservative
        return 64 * 1024 * 1024


def _round_up(x, m):
    return (x + m - 1) // m * m


# --------------------------------------------------------------------------
# Kernel
# --------------------------------------------------------------------------
def _updata1_kernel(skip_ref, data_ref, bits_ref, w1_ref, g1_ref, be1_ref,
                    w2_ref, g2_ref, be2_ref, out_ref, pad_ref, *, w, halo):
    """Fused ConvBlock: 2 x (3x3 conv -> train-mode BatchNorm -> LeakyReLU).

    Layout: channels on sublanes, flattened N*H*W pixels on lanes.  The conv
    input lives in a bf16 halo-padded VMEM scratch; each conv is 3 accumulated
    bf16 MXU matmuls (one per kernel row) with an f32 accumulator.
    """
    c_out, nhw = out_ref.shape
    c_skip = skip_ref.shape[0]
    c_data = data_ref.shape[0]
    c_in = c_skip + c_data
    c_in_p = w1_ref.shape[1] // 3            # zero-padded input channels (8-aligned)

    # ---- geometry masks: unpacked once from the per-pixel bitfield and reused
    # by both convolutions (hoisted out of the tap loops).
    bits = bits_ref[...]                     # (1, NHW) int32
    tap_mask = {}
    bi = 0
    for dy in (-1, 0, 1):
        for dx in (-1, 0, 1):
            if dy == 0 and dx == 0:
                continue
            tap_mask[(dy, dx)] = (bits & (1 << bi)) != 0
            bi += 1

    def conv3x3(rows, w_ref):
        """3x3 conv as 3 accumulated bf16 matmuls (K = 3*rows each)."""
        acc = None
        for ti, dy in enumerate((-1, 0, 1)):
            pieces = []
            for dx in (-1, 0, 1):
                k = dy * w + dx
                # Unaligned (static) lane-offset read of the bf16 halo scratch.
                piece = pad_ref[0:rows, halo + k:halo + k + nhw]
                m = tap_mask.get((dy, dx))
                if m is not None:
                    piece = jnp.where(m, piece, 0)        # stays bf16
                pieces.append(piece)
            cols = jnp.concatenate(pieces, axis=0)        # (3*rows, NHW) bf16
            part = jnp.dot(w_ref[ti * c_out:(ti + 1) * c_out, :], cols,
                           preferred_element_type=jnp.float32)
            acc = part if acc is None else acc + part
        return acc                                        # (c_out, NHW) f32

    def bn_lrelu(acc, gamma, beta):
        # Training-mode BatchNorm (batch stats, biased variance) folded into a
        # per-channel scale/shift; centered (two-pass) variance.  All f32.
        mean = jnp.mean(acc, axis=1, keepdims=True)
        ctr = acc - mean
        var = jnp.mean(ctr * ctr, axis=1, keepdims=True)
        scale = gamma * jax.lax.rsqrt(var + BN_EPS)
        shift = beta - mean * scale
        y = acc * scale + shift
        return jnp.where(y >= 0, y, LEAKY_SLOPE * y)      # LeakyReLU(0.01)

    # Zero only the two lane-aligned halo strips (not the whole scratch).
    zero_halo = jnp.zeros((pad_ref.shape[0], halo), jnp.bfloat16)
    pad_ref[:, 0:halo] = zero_halo
    pad_ref[:, halo + nhw:halo + nhw + halo] = zero_halo

    # --- SingleConvBlock 1.  Channel concat happens here (separate inputs are
    # written into adjacent scratch rows); conv bias omitted (cancels under the
    # training-mode BatchNorm).  Zero-padded channel rows are cleared so stale
    # VMEM (possible NaNs) cannot leak through 0-weights.
    pad_ref[0:c_skip, halo:halo + nhw] = skip_ref[...]
    pad_ref[c_skip:c_in, halo:halo + nhw] = data_ref[...]
    if c_in_p > c_in:
        pad_ref[c_in:c_in_p, halo:halo + nhw] = jnp.zeros(
            (c_in_p - c_in, nhw), jnp.bfloat16)
    y1 = bn_lrelu(conv3x3(c_in_p, w1_ref), g1_ref[...], be1_ref[...])

    # --- SingleConvBlock 2 (reuse the same halo scratch; bf16 for the MXU).
    pad_ref[0:c_out, halo:halo + nhw] = y1.astype(jnp.bfloat16)
    y2 = bn_lrelu(conv3x3(c_out, w2_ref), g2_ref[...], be2_ref[...])

    out_ref[...] = y2                                     # lane-dense f32 store


# --------------------------------------------------------------------------
# Wrapper (XLA glue: nearest resize, channel-major relayout)
# --------------------------------------------------------------------------
def _nearest_resize_nchw(x, out_h, out_w):
    """F.interpolate(..., size=(out_h, out_w)), default mode='nearest':
    src = min(floor(dst * in_size / out_size), in_size - 1)."""
    in_h, in_w = x.shape[2], x.shape[3]
    ih = jnp.minimum(
        jnp.floor(jnp.arange(out_h, dtype=jnp.float32) * (in_h / out_h)
                  ).astype(jnp.int32), in_h - 1)
    iw = jnp.minimum(
        jnp.floor(jnp.arange(out_w, dtype=jnp.float32) * (in_w / out_w)
                  ).astype(jnp.int32), in_w - 1)
    return x[:, :, ih, :][:, :, :, iw]


def _prep_weights(w_hwio, c_in, c_in_pad):
    """(3,3,Cin,Cout) HWIO -> (3*Cout, 3*Cin_pad) bf16; row-block ti holds the
    weights of kernel row ky=ti, columns ordered (kx, cin) to match the
    kernel's per-dy im2col slab.  Padded input channels get zero weights."""
    c_out = w_hwio.shape[-1]
    wt = jnp.transpose(w_hwio, (0, 3, 1, 2))              # (ky, Cout, kx, Cin)
    wt = jnp.pad(wt, ((0, 0), (0, 0), (0, 0), (0, c_in_pad - c_in)))
    return wt.reshape(3 * c_out, 3 * c_in_pad).astype(jnp.bfloat16)


@jax.jit
def up_data1(data_nchw, skip_nchw, params):
    """UpData1.forward(data, skipdata) -> (N, Cout, Hs, Ws)."""
    n, c_skip, h, w = skip_nchw.shape
    c_data = data_nchw.shape[1]
    c_in = c_skip + c_data
    c_out = params["w1"].shape[-1]
    assert c_out % 8 == 0, "out_channels must be a multiple of 8 (sublane tile)"

    nhw = n * h * w
    c_in_p = _round_up(c_in, 8)        # keeps the per-dy im2col 8-row aligned
    halo = _round_up(w + 1, _LANE)     # lane-aligned halo >= max tap offset
    c_scr = max(c_in_p, c_out)

    # Nearest resize + channel-major relayout (one XLA copy per input; the
    # channel concat and zero-pad now happen inside the kernel's scratch).
    # TODO(synk): with a channel-major producer/consumer these relayouts and
    # the final transpose would disappear entirely.
    data_up = _nearest_resize_nchw(data_nchw, h, w)
    skip_t = jnp.transpose(skip_nchw, (1, 0, 2, 3)).reshape(c_skip, nhw)
    data_t = jnp.transpose(data_up, (1, 0, 2, 3)).reshape(c_data, nhw)
    skip_t = skip_t.astype(jnp.bfloat16)
    data_t = data_t.astype(jnp.bfloat16)

    # Per-pixel tap-validity bitfield (8 bits, int32 carrier): bit k says tap k
    # (dy,dx order, center skipped) stays inside the image for this pixel.
    w_idx = jnp.tile(jnp.arange(w, dtype=jnp.int32), n * h)
    h_idx = jnp.tile(jnp.repeat(jnp.arange(h, dtype=jnp.int32), w), n)
    bits = jnp.zeros((nhw,), jnp.int32)
    bi = 0
    for dy in (-1, 0, 1):
        for dx in (-1, 0, 1):
            if dy == 0 and dx == 0:
                continue
            valid = ((w_idx + dx >= 0) & (w_idx + dx < w)
                     & (h_idx + dy >= 0) & (h_idx + dy < h))
            bits = bits | (valid.astype(jnp.int32) << bi)
            bi += 1
    bits = bits.reshape(1, nhw)

    w1t = _prep_weights(params["w1"], c_in, c_in_p)        # (3*Cout, 3*Cin_p) bf16
    w2t = _prep_weights(params["w2"], c_out, c_out)        # (3*Cout, 3*Cout)  bf16
    g1 = params["g1"].reshape(c_out, 1).astype(jnp.float32)
    be1 = params["be1"].reshape(c_out, 1).astype(jnp.float32)
    g2 = params["g2"].reshape(c_out, 1).astype(jnp.float32)
    be2 = params["be2"].reshape(c_out, 1).astype(jnp.float32)

    # Single-shot VMEM residency guard, derived from the actual chip
    # (batch-stat BN needs a global reduce, hence single invocation).
    phys_vmem = _physical_vmem_bytes()
    vmem_limit = min(phys_vmem * 3 // 4, 96 * 1024 * 1024)
    vmem_est = (2 * c_in * nhw                       # bf16 inputs
                + 4 * nhw                            # tap bitfield
                + 2 * 9 * (c_in_p + c_out) * c_out   # bf16 weights
                + 16 * c_out                         # BN params
                + 4 * c_out * nhw                    # f32 output
                + 2 * c_scr * (nhw + 2 * halo)       # bf16 halo scratch
                + 2 * 3 * c_scr * nhw                # one per-row im2col slab
                + 4 * 4 * c_out * nhw)               # f32 acc / BN temporaries
    assert vmem_est < vmem_limit * 3 // 4, (
        "feature map too large for the single-shot VMEM-resident kernel; "
        "use the gridded two-pass-BN variant")  # TODO(synk): gridded path

    flops = 2 * nhw * 9 * (c_in_p * c_out + c_out * c_out) + 12 * nhw * c_out
    bytes_accessed = (2 * c_in * nhw + 4 * nhw + 4 * c_out * nhw
                      + 2 * 9 * (c_in_p + c_out) * c_out + 16 * c_out)
    cost = pl.CostEstimate(flops=flops, transcendentals=2 * c_out,
                           bytes_accessed=bytes_accessed)

    vm = pl.BlockSpec(memory_space=pltpu.MemorySpace.VMEM)
    out_t = pl.pallas_call(
        functools.partial(_updata1_kernel, w=w, halo=halo),
        out_shape=jax.ShapeDtypeStruct((c_out, nhw), jnp.float32),
        in_specs=[vm] * 9,
        out_specs=vm,
        scratch_shapes=[pltpu.VMEM((c_scr, nhw + 2 * halo), jnp.bfloat16)],
        compiler_params=pltpu.CompilerParams(vmem_limit_bytes=int(vmem_limit)),
        cost_estimate=cost,
    )(skip_t, data_t, bits, w1t, g1, be1, w2t, g2, be2)

    return jnp.transpose(out_t.reshape(c_out, n, h, w), (1, 0, 2, 3))


# --------------------------------------------------------------------------
# Params + pure-JAX reference (mirrors the PyTorch module, incl. conv bias)
# --------------------------------------------------------------------------
def init_params(key, c_in, c_out):
    ks = jax.random.split(key, 8)
    return {
        # HWIO conv weights.  Conv biases are consumed only by the reference:
        # under training-mode BatchNorm they cancel exactly.
        "w1": jax.random.normal(ks[0], (3, 3, c_in, c_out), jnp.float32) * 0.1,
        "b1": jax.random.normal(ks[1], (c_out,), jnp.float32) * 0.1,
        "g1": 1.0 + 0.1 * jax.random.normal(ks[2], (c_out,), jnp.float32),
        "be1": 0.1 * jax.random.normal(ks[3], (c_out,), jnp.float32),
        "w2": jax.random.normal(ks[4], (3, 3, c_out, c_out), jnp.float32) * 0.1,
        "b2": jax.random.normal(ks[5], (c_out,), jnp.float32) * 0.1,
        "g2": 1.0 + 0.1 * jax.random.normal(ks[6], (c_out,), jnp.float32),
        "be2": 0.1 * jax.random.normal(ks[7], (c_out,), jnp.float32),
    }


def _q(x, quantize):
    return x.astype(jnp.bfloat16).astype(jnp.float32) if quantize else x


def _ref_single(x_nhwc, wgt, b, g, be, quantize):
    y = jax.lax.conv_general_dilated(
        _q(x_nhwc, quantize), _q(wgt, quantize), window_strides=(1, 1),
        padding="SAME", dimension_numbers=("NHWC", "HWIO", "NHWC")
    ) + b.reshape(1, 1, 1, -1)
    mean = jnp.mean(y, axis=(0, 1, 2))
    var = jnp.var(y, axis=(0, 1, 2))        # biased, like PyTorch BN (training)
    y = (y - mean) * jax.lax.rsqrt(var + BN_EPS) * g.reshape(1, 1, 1, -1) \
        + be.reshape(1, 1, 1, -1)
    return jnp.where(y >= 0, y, LEAKY_SLOPE * y)


def up_data1_ref(data_nchw, skip_nchw, p, quantize=False):
    """quantize=True mirrors the kernel's bf16 conv operands (f32 elsewhere)."""
    h, w = skip_nchw.shape[2], skip_nchw.shape[3]
    x = jnp.concatenate(
        [skip_nchw, _nearest_resize_nchw(data_nchw, h, w)], axis=1)
    x = jnp.transpose(x, (0, 2, 3, 1)).astype(jnp.float32)
    y = _ref_single(x, p["w1"], p["b1"], p["g1"], p["be1"], quantize)
    y = _ref_single(y, p["w2"], p["b2"], p["g2"], p["be2"], quantize)
    return jnp.transpose(y, (0, 3, 1, 2))


if __name__ == "__main__":
    key = jax.random.PRNGKey(0)
    k_d, k_s, k_p = jax.random.split(key, 3)

    N, C_SKIP, C_DATA, H, W = 2, 2, 2, 16, 16       # in_channels = 4
    C_OUT = 8
    skipdata = jax.random.normal(k_s, (N, C_SKIP, H, W), jnp.float32)
    data = jax.random.normal(k_d, (N, C_DATA, H // 2, W // 2), jnp.float32)
    params = init_params(k_p, C_SKIP + C_DATA, C_OUT)

    out = jax.block_until_ready(up_data1(data, skipdata, params))
    assert out.shape == (N, C_OUT, H, W), out.shape

    # Tight check vs a reference with the same bf16 conv-operand quantization
    # (validates im2col / masking / BN-fold logic).
    ref_q = jax.block_until_ready(up_data1_ref(data, skipdata, params, True))
    err_q = float(jnp.max(jnp.abs(out - ref_q)))
    assert jnp.allclose(out, ref_q, atol=2e-3, rtol=2e-3), \
        f"bf16-matched max abs err {err_q}"

    # Coarse sanity check vs the full-f32 reference (bf16 conv operands are a
    # deliberate MXU-throughput choice recommended by the perf review).
    ref_f = jax.block_until_ready(up_data1_ref(data, skipdata, params, False))
    err_f = float(jnp.max(jnp.abs(out - ref_f)))
    assert err_f < 0.25, f"f32-reference sanity max abs err {err_f}"

    print("KERNEL_OK")
</pallas_src>

<mosaic_0001>
module attributes {stable_mosaic.version = 11 : i64} {
  func.func @_updata1_kernel(%arg0: memref<2x512xbf16, #tpu.memory_space<vmem>>, %arg1: memref<2x512xbf16, #tpu.memory_space<vmem>>, %arg2: memref<1x512xi32, #tpu.memory_space<vmem>>, %arg3: memref<24x24xbf16, #tpu.memory_space<vmem>>, %arg4: memref<8x1xf32, #tpu.memory_space<vmem>>, %arg5: memref<8x1xf32, #tpu.memory_space<vmem>>, %arg6: memref<24x24xbf16, #tpu.memory_space<vmem>>, %arg7: memref<8x1xf32, #tpu.memory_space<vmem>>, %arg8: memref<8x1xf32, #tpu.memory_space<vmem>>, %arg9: memref<8x512xf32, #tpu.memory_space<vmem>>, %arg10: memref<8x768xbf16, #tpu.memory_space<vmem>>) attributes {dimension_semantics = [], scalar_prefetch = 0 : i64, scratch_operands = 1 : i64, tpu.core_type = #tpu.core_type<tc>} {
    %c0 = arith.constant 0 : index
    %c0_0 = arith.constant 0 : index
    %0 = vector.load %arg2[%c0, %c0_0] : memref<1x512xi32, #tpu.memory_space<vmem>>, vector<1x512xi32>
    %c1_i32 = arith.constant 1 : i32
    %1 = vector.broadcast %c1_i32 : i32 to vector<1x512xi32>
    %2 = arith.andi %0, %1 : vector<1x512xi32>
    %c0_i32 = arith.constant 0 : i32
    %3 = vector.broadcast %c0_i32 : i32 to vector<1x512xi32>
    %4 = arith.cmpi ne, %2, %3 : vector<1x512xi32>
    %c2_i32 = arith.constant 2 : i32
    %5 = vector.broadcast %c2_i32 : i32 to vector<1x512xi32>
    %6 = arith.andi %0, %5 : vector<1x512xi32>
    %c0_i32_1 = arith.constant 0 : i32
    %7 = vector.broadcast %c0_i32_1 : i32 to vector<1x512xi32>
    %8 = arith.cmpi ne, %6, %7 : vector<1x512xi32>
    %c4_i32 = arith.constant 4 : i32
    %9 = vector.broadcast %c4_i32 : i32 to vector<1x512xi32>
    %10 = arith.andi %0, %9 : vector<1x512xi32>
    %c0_i32_2 = arith.constant 0 : i32
    %11 = vector.broadcast %c0_i32_2 : i32 to vector<1x512xi32>
    %12 = arith.cmpi ne, %10, %11 : vector<1x512xi32>
    %c8_i32 = arith.constant 8 : i32
    %13 = vector.broadcast %c8_i32 : i32 to vector<1x512xi32>
    %14 = arith.andi %0, %13 : vector<1x512xi32>
    %c0_i32_3 = arith.constant 0 : i32
    %15 = vector.broadcast %c0_i32_3 : i32 to vector<1x512xi32>
    %16 = arith.cmpi ne, %14, %15 : vector<1x512xi32>
    %c16_i32 = arith.constant 16 : i32
    %17 = vector.broadcast %c16_i32 : i32 to vector<1x512xi32>
    %18 = arith.andi %0, %17 : vector<1x512xi32>
    %c0_i32_4 = arith.constant 0 : i32
    %19 = vector.broadcast %c0_i32_4 : i32 to vector<1x512xi32>
    %20 = arith.cmpi ne, %18, %19 : vector<1x512xi32>
    %c32_i32 = arith.constant 32 : i32
    %21 = vector.broadcast %c32_i32 : i32 to vector<1x512xi32>
    %22 = arith.andi %0, %21 : vector<1x512xi32>
    %c0_i32_5 = arith.constant 0 : i32
    %23 = vector.broadcast %c0_i32_5 : i32 to vector<1x512xi32>
    %24 = arith.cmpi ne, %22, %23 : vector<1x512xi32>
    %c64_i32 = arith.constant 64 : i32
    %25 = vector.broadcast %c64_i32 : i32 to vector<1x512xi32>
    %26 = arith.andi %0, %25 : vector<1x512xi32>
    %c0_i32_6 = arith.constant 0 : i32
    %27 = vector.broadcast %c0_i32_6 : i32 to vector<1x512xi32>
    %28 = arith.cmpi ne, %26, %27 : vector<1x512xi32>
    %c128_i32 = arith.constant 128 : i32
    %29 = vector.broadcast %c128_i32 : i32 to vector<1x512xi32>
    %30 = arith.andi %0, %29 : vector<1x512xi32>
    %c0_i32_7 = arith.constant 0 : i32
    %31 = vector.broadcast %c0_i32_7 : i32 to vector<1x512xi32>
    %32 = arith.cmpi ne, %30, %31 : vector<1x512xi32>
    %cst = arith.constant 0.000000e+00 : bf16
    %33 = vector.broadcast %cst : bf16 to vector<8x128xbf16>
    %c0_8 = arith.constant 0 : index
    %c0_9 = arith.constant 0 : index
    %34 = vector.load %arg10[%c0_8, %c0_9] : memref<8x768xbf16, #tpu.memory_space<vmem>>, vector<8x128xbf16>
    tpu.vector_store %arg10[%c0_8, %c0_9], %33 {strides = array<i32>} : memref<8x768xbf16, #tpu.memory_space<vmem>>, vector<8x128xbf16>,
    %c0_10 = arith.constant 0 : index
    %c640 = arith.constant 640 : index
    %35 = vector.load %arg10[%c0_10, %c640] : memref<8x768xbf16, #tpu.memory_space<vmem>>, vector<8x128xbf16>
    tpu.vector_store %arg10[%c0_10, %c640], %33 {strides = array<i32>} : memref<8x768xbf16, #tpu.memory_space<vmem>>, vector<8x128xbf16>,
    %c0_11 = arith.constant 0 : index
    %c0_12 = arith.constant 0 : index
    %36 = vector.load %arg0[%c0_11, %c0_12] : memref<2x512xbf16, #tpu.memory_space<vmem>>, vector<2x512xbf16>
    %c0_13 = arith.constant 0 : index
    %c128 = arith.constant 128 : index
    %37 = vector.load %arg10[%c0_13, %c128] : memref<8x768xbf16, #tpu.memory_space<vmem>>, vector<2x512xbf16>
    tpu.vector_store %arg10[%c0_13, %c128], %36 {strides = array<i32>} : memref<8x768xbf16, #tpu.memory_space<vmem>>, vector<2x512xbf16>,
    %c0_14 = arith.constant 0 : index
    %c0_15 = arith.constant 0 : index
    %38 = vector.load %arg1[%c0_14, %c0_15] : memref<2x512xbf16, #tpu.memory_space<vmem>>, vector<2x512xbf16>
    %c2 = arith.constant 2 : index
    %c128_16 = arith.constant 128 : index
    %39 = vector.load %arg10[%c2, %c128_16] : memref<8x768xbf16, #tpu.memory_space<vmem>>, vector<2x512xbf16>
    tpu.vector_store %arg10[%c2, %c128_16], %38 {strides = array<i32>} : memref<8x768xbf16, #tpu.memory_space<vmem>>, vector<2x512xbf16>,
    %cst_17 = arith.constant 0.000000e+00 : bf16
    %40 = vector.broadcast %cst_17 : bf16 to vector<4x512xbf16>
    %c4 = arith.constant 4 : index
    %c128_18 = arith.constant 128 : index
    %41 = vector.load %arg10[%c4, %c128_18] : memref<8x768xbf16, #tpu.memory_space<vmem>>, vector<4x512xbf16>
    tpu.vector_store %arg10[%c4, %c128_18], %40 {strides = array<i32>} : memref<8x768xbf16, #tpu.memory_space<vmem>>, vector<4x512xbf16>,
    %c0_19 = arith.constant 0 : index
    %c111 = arith.constant 111 : index
    %42 = vector.load %arg10[%c0_19, %c111] : memref<8x768xbf16, #tpu.memory_space<vmem>>, vector<8x512xbf16>
    %c0_i32_20 = arith.constant 0 : i32
    %43 = arith.sitofp %c0_i32_20 : i32 to bf16
    %44 = vector.shape_cast %4 : vector<1x512xi1> to vector<1x512xi1>
    %45 = vector.broadcast %44 : vector<1x512xi1> to vector<8x512xi1>
    %46 = vector.broadcast %43 : bf16 to vector<8x512xbf16>
    %47 = arith.select %45, %42, %46 : vector<8x512xi1>, vector<8x512xbf16>
    %c0_21 = arith.constant 0 : index
    %c112 = arith.constant 112 : index
    %48 = vector.load %arg10[%c0_21, %c112] : memref<8x768xbf16, #tpu.memory_space<vmem>>, vector<8x512xbf16>
    %c0_i32_22 = arith.constant 0 : i32
    %49 = arith.sitofp %c0_i32_22 : i32 to bf16
    %50 = vector.shape_cast %8 : vector<1x512xi1> to vector<1x512xi1>
    %51 = vector.broadcast %50 : vector<1x512xi1> to vector<8x512xi1>
    %52 = vector.broadcast %49 : bf16 to vector<8x512xbf16>
    %53 = arith.select %51, %48, %52 : vector<8x512xi1>, vector<8x512xbf16>
    %c0_23 = arith.constant 0 : index
    %c113 = arith.constant 113 : index
    %54 = vector.load %arg10[%c0_23, %c113] : memref<8x768xbf16, #tpu.memory_space<vmem>>, vector<8x512xbf16>
    %c0_i32_24 = arith.constant 0 : i32
    %55 = arith.sitofp %c0_i32_24 : i32 to bf16
    %56 = vector.shape_cast %12 : vector<1x512xi1> to vector<1x512xi1>
    %57 = vector.broadcast %56 : vector<1x512xi1> to vector<8x512xi1>
    %58 = vector.broadcast %55 : bf16 to vector<8x512xbf16>
    %59 = arith.select %57, %54, %58 : vector<8x512xi1>, vector<8x512xbf16>
    %60 = tpu.concatenate %47, %53, %59 in 0 : vector<8x512xbf16>, vector<8x512xbf16>, vector<8x512xbf16> -> vector<24x512xbf16>
    %c0_25 = arith.constant 0 : index
    %c0_26 = arith.constant 0 : index
    %61 = vector.load %arg3[%c0_25, %c0_26] : memref<24x24xbf16, #tpu.memory_space<vmem>>, vector<8x24xbf16>
    %cst_27 = arith.constant dense<0.000000e+00> : vector<8x512xf32>
    %62 = tpu.matmul %61, %60, %cst_27 {dimension_numbers = #tpu.dot_dimension_numbers<[1], [0], [0], [1], [0, 0, 1, 1], [], []>} : vector<8x24xbf16>, vector<24x512xbf16>, vector<8x512xf32> -> vector<8x512xf32>
    %c0_28 = arith.constant 0 : index
    %c127 = arith.constant 127 : index
    %63 = vector.load %arg10[%c0_28, %c127] : memref<8x768xbf16, #tpu.memory_space<vmem>>, vector<8x512xbf16>
    %c0_i32_29 = arith.constant 0 : i32
    %64 = arith.sitofp %c0_i32_29 : i32 to bf16
    %65 = vector.shape_cast %16 : vector<1x512xi1> to vector<1x512xi1>
    %66 = vector.broadcast %65 : vector<1x512xi1> to vector<8x512xi1>
    %67 = vector.broadcast %64 : bf16 to vector<8x512xbf16>
    %68 = arith.select %66, %63, %67 : vector<8x512xi1>, vector<8x512xbf16>
    %c0_30 = arith.constant 0 : index
    %c128_31 = arith.constant 128 : index
    %69 = vector.load %arg10[%c0_30, %c128_31] : memref<8x768xbf16, #tpu.memory_space<vmem>>, vector<8x512xbf16>
    %c0_32 = arith.constant 0 : index
    %c129 = arith.constant 129 : index
    %70 = vector.load %arg10[%c0_32, %c129] : memref<8x768xbf16, #tpu.memory_space<vmem>>, vector<8x512xbf16>
    %c0_i32_33 = arith.constant 0 : i32
    %71 = arith.sitofp %c0_i32_33 : i32 to bf16
    %72 = vector.shape_cast %20 : vector<1x512xi1> to vector<1x512xi1>
    %73 = vector.broadcast %72 : vector<1x512xi1> to vector<8x512xi1>
    %74 = vector.broadcast %71 : bf16 to vector<8x512xbf16>
    %75 = arith.select %73, %70, %74 : vector<8x512xi1>, vector<8x512xbf16>
    %76 = tpu.concatenate %68, %69, %75 in 0 : vector<8x512xbf16>, vector<8x512xbf16>, vector<8x512xbf16> -> vector<24x512xbf16>
    %c8 = arith.constant 8 : index
    %c0_34 = arith.constant 0 : index
    %77 = vector.load %arg3[%c8, %c0_34] : memref<24x24xbf16, #tpu.memory_space<vmem>>, vector<8x24xbf16>
    %cst_35 = arith.constant dense<0.000000e+00> : vector<8x512xf32>
    %78 = tpu.matmul %77, %76, %cst_35 {dimension_numbers = #tpu.dot_dimension_numbers<[1], [0], [0], [1], [0, 0, 1, 1], [], []>} : vector<8x24xbf16>, vector<24x512xbf16>, vector<8x512xf32> -> vector<8x512xf32>
    %79 = arith.addf %62, %78 : vector<8x512xf32>
    %c0_36 = arith.constant 0 : index
    %c143 = arith.constant 143 : index
    %80 = vector.load %arg10[%c0_36, %c143] : memref<8x768xbf16, #tpu.memory_space<vmem>>, vector<8x512xbf16>
    %c0_i32_37 = arith.constant 0 : i32
    %81 = arith.sitofp %c0_i32_37 : i32 to bf16
    %82 = vector.shape_cast %24 : vector<1x512xi1> to vector<1x512xi1>
    %83 = vector.broadcast %82 : vector<1x512xi1> to vector<8x512xi1>
    %84 = vector.broadcast %81 : bf16 to vector<8x512xbf16>
    %85 = arith.select %83, %80, %84 : vector<8x512xi1>, vector<8x512xbf16>
    %c0_38 = arith.constant 0 : index
    %c144 = arith.constant 144 : index
    %86 = vector.load %arg10[%c0_38, %c144] : memref<8x768xbf16, #tpu.memory_space<vmem>>, vector<8x512xbf16>
    %c0_i32_39 = arith.constant 0 : i32
    %87 = arith.sitofp %c0_i32_39 : i32 to bf16
    %88 = vector.shape_cast %28 : vector<1x512xi1> to vector<1x512xi1>
    %89 = vector.broadcast %88 : vector<1x512xi1> to vector<8x512xi1>
    %90 = vector.broadcast %87 : bf16 to vector<8x512xbf16>
    %91 = arith.select %89, %86, %90 : vector<8x512xi1>, vector<8x512xbf16>
    %c0_40 = arith.constant 0 : index
    %c145 = arith.constant 145 : index
    %92 = vector.load %arg10[%c0_40, %c145] : memref<8x768xbf16, #tpu.memory_space<vmem>>, vector<8x512xbf16>
    %c0_i32_41 = arith.constant 0 : i32
    %93 = arith.sitofp %c0_i32_41 : i32 to bf16
    %94 = vector.shape_cast %32 : vector<1x512xi1> to vector<1x512xi1>
    %95 = vector.broadcast %94 : vector<1x512xi1> to vector<8x512xi1>
    %96 = vector.broadcast %93 : bf16 to vector<8x512xbf16>
    %97 = arith.select %95, %92, %96 : vector<8x512xi1>, vector<8x512xbf16>
    %98 = tpu.concatenate %85, %91, %97 in 0 : vector<8x512xbf16>, vector<8x512xbf16>, vector<8x512xbf16> -> vector<24x512xbf16>
    %c16 = arith.constant 16 : index
    %c0_42 = arith.constant 0 : index
    %99 = vector.load %arg3[%c16, %c0_42] : memref<24x24xbf16, #tpu.memory_space<vmem>>, vector<8x24xbf16>
    %cst_43 = arith.constant dense<0.000000e+00> : vector<8x512xf32>
    %100 = tpu.matmul %99, %98, %cst_43 {dimension_numbers = #tpu.dot_dimension_numbers<[1], [0], [0], [1], [0, 0, 1, 1], [], []>} : vector<8x24xbf16>, vector<24x512xbf16>, vector<8x512xf32> -> vector<8x512xf32>
    %101 = arith.addf %79, %100 : vector<8x512xf32>
    %c0_44 = arith.constant 0 : index
    %c0_45 = arith.constant 0 : index
    %102 = vector.load %arg4[%c0_44, %c0_45] : memref<8x1xf32, #tpu.memory_space<vmem>>, vector<8x1xf32>
    %c0_46 = arith.constant 0 : index
    %c0_47 = arith.constant 0 : index
    %103 = vector.load %arg5[%c0_46, %c0_47] : memref<8x1xf32, #tpu.memory_space<vmem>>, vector<8x1xf32>
    %cst_48 = arith.constant dense<0.000000e+00> : vector<8xf32>
    %104 = vector.multi_reduction <add>, %101, %cst_48 [1] : vector<8x512xf32> to vector<8xf32>
    %105 = vector.shape_cast %104 : vector<8xf32> to vector<8x1xf32>
    %cst_49 = arith.constant 5.120000e+02 : f32
    %106 = vector.broadcast %cst_49 : f32 to vector<8x1xf32>
    %107 = arith.divf %105, %106 : vector<8x1xf32>
    %108 = vector.broadcast %107 : vector<8x1xf32> to vector<8x512xf32>
    %109 = arith.subf %101, %108 : vector<8x512xf32>
    %110 = arith.mulf %109, %109 : vector<8x512xf32>
    %cst_50 = arith.constant dense<0.000000e+00> : vector<8xf32>
    %111 = vector.multi_reduction <add>, %110, %cst_50 [1] : vector<8x512xf32> to vector<8xf32>
    %112 = vector.shape_cast %111 : vector<8xf32> to vector<8x1xf32>
    %cst_51 = arith.constant 5.120000e+02 : f32
    %113 = vector.broadcast %cst_51 : f32 to vector<8x1xf32>
    %114 = arith.divf %112, %113 : vector<8x1xf32>
    %cst_52 = arith.constant 9.99999974E-6 : f32
    %115 = vector.broadcast %cst_52 : f32 to vector<8x1xf32>
    %116 = arith.addf %114, %115 : vector<8x1xf32>
    %117 = math.rsqrt %116 : vector<8x1xf32>
    %118 = arith.mulf %102, %117 : vector<8x1xf32>
    %119 = arith.mulf %107, %118 : vector<8x1xf32>
    %120 = arith.subf %103, %119 : vector<8x1xf32>
    %121 = vector.broadcast %118 : vector<8x1xf32> to vector<8x512xf32>
    %122 = arith.mulf %101, %121 : vector<8x512xf32>
    %123 = vector.broadcast %120 : vector<8x1xf32> to vector<8x512xf32>
    %124 = arith.addf %122, %123 : vector<8x512xf32>
    %cst_53 = arith.constant 0.000000e+00 : f32
    %125 = vector.broadcast %cst_53 : f32 to vector<8x512xf32>
    %126 = arith.cmpf oge, %124, %125 : vector<8x512xf32>
    %cst_54 = arith.constant 0.00999999977 : f32
    %127 = vector.broadcast %cst_54 : f32 to vector<8x512xf32>
    %128 = arith.mulf %127, %124 : vector<8x512xf32>
    %129 = arith.select %126, %124, %128 : vector<8x512xi1>, vector<8x512xf32>
    %130 = arith.truncf %129 : vector<8x512xf32> to vector<8x512xbf16>
    %c0_55 = arith.constant 0 : index
    %c128_56 = arith.constant 128 : index
    %131 = vector.load %arg10[%c0_55, %c128_56] : memref<8x768xbf16, #tpu.memory_space<vmem>>, vector<8x512xbf16>
    tpu.vector_store %arg10[%c0_55, %c128_56], %130 {strides = array<i32>} : memref<8x768xbf16, #tpu.memory_space<vmem>>, vector<8x512xbf16>,
    %c0_57 = arith.constant 0 : index
    %c111_58 = arith.constant 111 : index
    %132 = vector.load %arg10[%c0_57, %c111_58] : memref<8x768xbf16, #tpu.memory_space<vmem>>, vector<8x512xbf16>
    %c0_i32_59 = arith.constant 0 : i32
    %133 = arith.sitofp %c0_i32_59 : i32 to bf16
    %134 = vector.shape_cast %4 : vector<1x512xi1> to vector<1x512xi1>
    %135 = vector.broadcast %134 : vector<1x512xi1> to vector<8x512xi1>
    %136 = vector.broadcast %133 : bf16 to vector<8x512xbf16>
    %137 = arith.select %135, %132, %136 : vector<8x512xi1>, vector<8x512xbf16>
    %c0_60 = arith.constant 0 : index
    %c112_61 = arith.constant 112 : index
    %138 = vector.load %arg10[%c0_60, %c112_61] : memref<8x768xbf16, #tpu.memory_space<vmem>>, vector<8x512xbf16>
    %c0_i32_62 = arith.constant 0 : i32
    %139 = arith.sitofp %c0_i32_62 : i32 to bf16
    %140 = vector.shape_cast %8 : vector<1x512xi1> to vector<1x512xi1>
    %141 = vector.broadcast %140 : vector<1x512xi1> to vector<8x512xi1>
    %142 = vector.broadcast %139 : bf16 to vector<8x512xbf16>
    %143 = arith.select %141, %138, %142 : vector<8x512xi1>, vector<8x512xbf16>
    %c0_63 = arith.constant 0 : index
    %c113_64 = arith.constant 113 : index
    %144 = vector.load %arg10[%c0_63, %c113_64] : memref<8x768xbf16, #tpu.memory_space<vmem>>, vector<8x512xbf16>
    %c0_i32_65 = arith.constant 0 : i32
    %145 = arith.sitofp %c0_i32_65 : i32 to bf16
    %146 = vector.shape_cast %12 : vector<1x512xi1> to vector<1x512xi1>
    %147 = vector.broadcast %146 : vector<1x512xi1> to vector<8x512xi1>
    %148 = vector.broadcast %145 : bf16 to vector<8x512xbf16>
    %149 = arith.select %147, %144, %148 : vector<8x512xi1>, vector<8x512xbf16>
    %150 = tpu.concatenate %137, %143, %149 in 0 : vector<8x512xbf16>, vector<8x512xbf16>, vector<8x512xbf16> -> vector<24x512xbf16>
    %c0_66 = arith.constant 0 : index
    %c0_67 = arith.constant 0 : index
    %151 = vector.load %arg6[%c0_66, %c0_67] : memref<24x24xbf16, #tpu.memory_space<vmem>>, vector<8x24xbf16>
    %cst_68 = arith.constant dense<0.000000e+00> : vector<8x512xf32>
    %152 = tpu.matmul %151, %150, %cst_68 {dimension_numbers = #tpu.dot_dimension_numbers<[1], [0], [0], [1], [0, 0, 1, 1], [], []>} : vector<8x24xbf16>, vector<24x512xbf16>, vector<8x512xf32> -> vector<8x512xf32>
    %c0_69 = arith.constant 0 : index
    %c127_70 = arith.constant 127 : index
    %153 = vector.load %arg10[%c0_69, %c127_70] : memref<8x768xbf16, #tpu.memory_space<vmem>>, vector<8x512xbf16>
    %c0_i32_71 = arith.constant 0 : i32
    %154 = arith.sitofp %c0_i32_71 : i32 to bf16
    %155 = vector.shape_cast %16 : vector<1x512xi1> to vector<1x512xi1>
    %156 = vector.broadcast %155 : vector<1x512xi1> to vector<8x512xi1>
    %157 = vector.broadcast %154 : bf16 to vector<8x512xbf16>
    %158 = arith.select %156, %153, %157 : vector<8x512xi1>, vector<8x512xbf16>
    %c0_72 = arith.constant 0 : index
    %c128_73 = arith.constant 128 : index
    %159 = vector.load %arg10[%c0_72, %c128_73] : memref<8x768xbf16, #tpu.memory_space<vmem>>, vector<8x512xbf16>
    %c0_74 = arith.constant 0 : index
    %c129_75 = arith.constant 129 : index
    %160 = vector.load %arg10[%c0_74, %c129_75] : memref<8x768xbf16, #tpu.memory_space<vmem>>, vector<8x512xbf16>
    %c0_i32_76 = arith.constant 0 : i32
    %161 = arith.sitofp %c0_i32_76 : i32 to bf16
    %162 = vector.shape_cast %20 : vector<1x512xi1> to vector<1x512xi1>
    %163 = vector.broadcast %162 : vector<1x512xi1> to vector<8x512xi1>
    %164 = vector.broadcast %161 : bf16 to vector<8x512xbf16>
    %165 = arith.select %163, %160, %164 : vector<8x512xi1>, vector<8x512xbf16>
    %166 = tpu.concatenate %158, %159, %165 in 0 : vector<8x512xbf16>, vector<8x512xbf16>, vector<8x512xbf16> -> vector<24x512xbf16>
    %c8_77 = arith.constant 8 : index
    %c0_78 = arith.constant 0 : index
    %167 = vector.load %arg6[%c8_77, %c0_78] : memref<24x24xbf16, #tpu.memory_space<vmem>>, vector<8x24xbf16>
    %cst_79 = arith.constant dense<0.000000e+00> : vector<8x512xf32>
    %168 = tpu.matmul %167, %166, %cst_79 {dimension_numbers = #tpu.dot_dimension_numbers<[1], [0], [0], [1], [0, 0, 1, 1], [], []>} : vector<8x24xbf16>, vector<24x512xbf16>, vector<8x512xf32> -> vector<8x512xf32>
    %169 = arith.addf %152, %168 : vector<8x512xf32>
    %c0_80 = arith.constant 0 : index
    %c143_81 = arith.constant 143 : index
    %170 = vector.load %arg10[%c0_80, %c143_81] : memref<8x768xbf16, #tpu.memory_space<vmem>>, vector<8x512xbf16>
    %c0_i32_82 = arith.constant 0 : i32
    %171 = arith.sitofp %c0_i32_82 : i32 to bf16
    %172 = vector.shape_cast %24 : vector<1x512xi1> to vector<1x512xi1>
    %173 = vector.broadcast %172 : vector<1x512xi1> to vector<8x512xi1>
    %174 = vector.broadcast %171 : bf16 to vector<8x512xbf16>
    %175 = arith.select %173, %170, %174 : vector<8x512xi1>, vector<8x512xbf16>
    %c0_83 = arith.constant 0 : index
    %c144_84 = arith.constant 144 : index
    %176 = vector.load %arg10[%c0_83, %c144_84] : memref<8x768xbf16, #tpu.memory_space<vmem>>, vector<8x512xbf16>
    %c0_i32_85 = arith.constant 0 : i32
    %177 = arith.sitofp %c0_i32_85 : i32 to bf16
    %178 = vector.shape_cast %28 : vector<1x512xi1> to vector<1x512xi1>
    %179 = vector.broadcast %178 : vector<1x512xi1> to vector<8x512xi1>
    %180 = vector.broadcast %177 : bf16 to vector<8x512xbf16>
    %181 = arith.select %179, %176, %180 : vector<8x512xi1>, vector<8x512xbf16>
    %c0_86 = arith.constant 0 : index
    %c145_87 = arith.constant 145 : index
    %182 = vector.load %arg10[%c0_86, %c145_87] : memref<8x768xbf16, #tpu.memory_space<vmem>>, vector<8x512xbf16>
    %c0_i32_88 = arith.constant 0 : i32
    %183 = arith.sitofp %c0_i32_88 : i32 to bf16
    %184 = vector.shape_cast %32 : vector<1x512xi1> to vector<1x512xi1>
    %185 = vector.broadcast %184 : vector<1x512xi1> to vector<8x512xi1>
    %186 = vector.broadcast %183 : bf16 to vector<8x512xbf16>
    %187 = arith.select %185, %182, %186 : vector<8x512xi1>, vector<8x512xbf16>
    %188 = tpu.concatenate %175, %181, %187 in 0 : vector<8x512xbf16>, vector<8x512xbf16>, vector<8x512xbf16> -> vector<24x512xbf16>
    %c16_89 = arith.constant 16 : index
    %c0_90 = arith.constant 0 : index
    %189 = vector.load %arg6[%c16_89, %c0_90] : memref<24x24xbf16, #tpu.memory_space<vmem>>, vector<8x24xbf16>
    %cst_91 = arith.constant dense<0.000000e+00> : vector<8x512xf32>
    %190 = tpu.matmul %189, %188, %cst_91 {dimension_numbers = #tpu.dot_dimension_numbers<[1], [0], [0], [1], [0, 0, 1, 1], [], []>} : vector<8x24xbf16>, vector<24x512xbf16>, vector<8x512xf32> -> vector<8x512xf32>
    %191 = arith.addf %169, %190 : vector<8x512xf32>
    %c0_92 = arith.constant 0 : index
    %c0_93 = arith.constant 0 : index
    %192 = vector.load %arg7[%c0_92, %c0_93] : memref<8x1xf32, #tpu.memory_space<vmem>>, vector<8x1xf32>
    %c0_94 = arith.constant 0 : index
    %c0_95 = arith.constant 0 : index
    %193 = vector.load %arg8[%c0_94, %c0_95] : memref<8x1xf32, #tpu.memory_space<vmem>>, vector<8x1xf32>
    %cst_96 = arith.constant dense<0.000000e+00> : vector<8xf32>
    %194 = vector.multi_reduction <add>, %191, %cst_96 [1] : vector<8x512xf32> to vector<8xf32>
    %195 = vector.shape_cast %194 : vector<8xf32> to vector<8x1xf32>
    %cst_97 = arith.constant 5.120000e+02 : f32
    %196 = vector.broadcast %cst_97 : f32 to vector<8x1xf32>
    %197 = arith.divf %195, %196 : vector<8x1xf32>
    %198 = vector.broadcast %197 : vector<8x1xf32> to vector<8x512xf32>
    %199 = arith.subf %191, %198 : vector<8x512xf32>
    %200 = arith.mulf %199, %199 : vector<8x512xf32>
    %cst_98 = arith.constant dense<0.000000e+00> : vector<8xf32>
    %201 = vector.multi_reduction <add>, %200, %cst_98 [1] : vector<8x512xf32> to vector<8xf32>
    %202 = vector.shape_cast %201 : vector<8xf32> to vector<8x1xf32>
    %cst_99 = arith.constant 5.120000e+02 : f32
    %203 = vector.broadcast %cst_99 : f32 to vector<8x1xf32>
    %204 = arith.divf %202, %203 : vector<8x1xf32>
    %cst_100 = arith.constant 9.99999974E-6 : f32
    %205 = vector.broadcast %cst_100 : f32 to vector<8x1xf32>
    %206 = arith.addf %204, %205 : vector<8x1xf32>
    %207 = math.rsqrt %206 : vector<8x1xf32>
    %208 = arith.mulf %192, %207 : vector<8x1xf32>
    %209 = arith.mulf %197, %208 : vector<8x1xf32>
    %210 = arith.subf %193, %209 : vector<8x1xf32>
    %211 = vector.broadcast %208 : vector<8x1xf32> to vector<8x512xf32>
    %212 = arith.mulf %191, %211 : vector<8x512xf32>
    %213 = vector.broadcast %210 : vector<8x1xf32> to vector<8x512xf32>
    %214 = arith.addf %212, %213 : vector<8x512xf32>
    %cst_101 = arith.constant 0.000000e+00 : f32
    %215 = vector.broadcast %cst_101 : f32 to vector<8x512xf32>
    %216 = arith.cmpf oge, %214, %215 : vector<8x512xf32>
    %cst_102 = arith.constant 0.00999999977 : f32
    %217 = vector.broadcast %cst_102 : f32 to vector<8x512xf32>
    %218 = arith.mulf %217, %214 : vector<8x512xf32>
    %219 = arith.select %216, %214, %218 : vector<8x512xi1>, vector<8x512xf32>
    %c0_103 = arith.constant 0 : index
    %c0_104 = arith.constant 0 : index
    %220 = vector.load %arg9[%c0_103, %c0_104] : memref<8x512xf32, #tpu.memory_space<vmem>>, vector<8x512xf32>
    tpu.vector_store %arg9[%c0_103, %c0_104], %219 {strides = array<i32>} : memref<8x512xf32, #tpu.memory_space<vmem>>, vector<8x512xf32>,
    return
  }
}

</mosaic_0001>

<llo_original>
// kernel: up_data1.1
$region0: #{up_data1.1}
  #allocation0 [shape = 'u32[]', space=smem, size = 0x4, offset = 0x4, fixed_abs, tag = 'smem constant byte address 0x4 - core index']
  #allocation1 [shape = 'u32[144,128]{1,0:T(1,128)}', space=vmem, size = 0x12000, scoped, tag = 'internal scratch']
  #allocation2 [shape = 'bf16[8,768]{1,0:T(8,128)(2,1)}', space=vmem, size = 0x3000, scoped, tag = 'scratch operand']
  %s0 = inlined_call_operand.vmem [shape: bf16[2,512], index: 0, kind: input, shape index: {}]
  %s1 = inlined_call_operand.vmem [shape: bf16[2,512], index: 1, kind: input, shape index: {}]
  %s2 = inlined_call_operand.vmem [shape: s32[1,512], index: 2, kind: input, shape index: {}]
  %s3 = inlined_call_operand.vmem [shape: bf16[24,24], index: 3, kind: input, shape index: {}]
  %s4 = inlined_call_operand.vmem [shape: f32[8,1], index: 4, kind: input, shape index: {}]
  %s5 = inlined_call_operand.vmem [shape: f32[8,1], index: 5, kind: input, shape index: {}]
  %s6 = inlined_call_operand.vmem [shape: bf16[24,24], index: 6, kind: input, shape index: {}]
  %s7 = inlined_call_operand.vmem [shape: f32[8,1], index: 7, kind: input, shape index: {}]
  %s8 = inlined_call_operand.vmem [shape: f32[8,1], index: 8, kind: input, shape index: {}]
  %s9 = inlined_call_operand.vmem [shape: f32[8,512], index: 9, kind: output, shape index: {}]
  %s10 = sld [smem:[#allocation0]]
  $region46: #{up_data1.1} parent=0
    _
  %s12 = ssub.s32 1, %s10
  %s13 = scalar_select 0, %s12, %s10
  // Predicated region
  $region2: #{up_data1.1} parent=0 // pred_check
    _
  $region3: #{up_data1.1} parent=0 // pred_check_branch
    %15 = sbr.rel (0) target = $region5
  $region4: #{up_data1.1} parent=0 // pred_region
    _
  $region5: #{up_data1.1} parent=0 // pred_fallthru
    _
  // Predicated region
  $region6: #{up_data1.1} parent=0 // pred_check
    _
  $region7: #{up_data1.1} parent=0 // pred_check_branch
    %17 = sbr.rel (0) target = $region9
  $region8: #{up_data1.1} parent=0 // pred_region
    _
  $region9: #{up_data1.1} parent=0 // pred_fallthru
    _
  // Predicated region
  $region10: #{up_data1.1} parent=0 // pred_check
    _
  $region11: #{up_data1.1} parent=0 // pred_check_branch
    %19 = sbr.rel (0) target = $region13
  $region12: #{up_data1.1} parent=0 // pred_region
    _
  $region13: #{up_data1.1} parent=0 // pred_fallthru
    _
  // Predicated region
  $region14: #{up_data1.1} parent=0 // pred_check
    _
  $region15: #{up_data1.1} parent=0 // pred_check_branch
    %21 = sbr.rel (0) target = $region17
  $region16: #{up_data1.1} parent=0 // pred_region
    _
  $region17: #{up_data1.1} parent=0 // pred_fallthru
    _
  // Predicated region
  $region18: #{up_data1.1} parent=0 // pred_check
    _
  $region19: #{up_data1.1} parent=0 // pred_check_branch
    %23 = sbr.rel (0) target = $region21
  $region20: #{up_data1.1} parent=0 // pred_region
    _
  $region21: #{up_data1.1} parent=0 // pred_fallthru
    _
  // Predicated region
  $region22: #{up_data1.1} parent=0 // pred_check
    _
  $region23: #{up_data1.1} parent=0 // pred_check_branch
    %25 = sbr.rel (0) target = $region25
  $region24: #{up_data1.1} parent=0 // pred_region
    _
  $region25: #{up_data1.1} parent=0 // pred_fallthru
    _
  // Predicated region
  $region26: #{up_data1.1} parent=0 // pred_check
    _
  $region27: #{up_data1.1} parent=0 // pred_check_branch
    %27 = sbr.rel (0) target = $region29
  $region28: #{up_data1.1} parent=0 // pred_region
    _
  $region29: #{up_data1.1} parent=0 // pred_fallthru
    _
  // Predicated region
  $region30: #{up_data1.1} parent=0 // pred_check
    _
  $region31: #{up_data1.1} parent=0 // pred_check_branch
    %29 = sbr.rel (0) target = $region33
  $region32: #{up_data1.1} parent=0 // pred_region
    _
  $region33: #{up_data1.1} parent=0 // pred_fallthru
    _
  // Predicated region
  $region34: #{up_data1.1} parent=0 // pred_check
    _
  $region35: #{up_data1.1} parent=0 // pred_check_branch
    %31 = sbr.rel (0) target = $region37
  $region36: #{up_data1.1} parent=0 // pred_region
    _
  $region37: #{up_data1.1} parent=0 // pred_fallthru
    _
  %v35 = vld [vmem:[%s2] sm:$0xf]
  %v36 = vand.u32 %v35, 1
  %vm37 = vcmp.ne.s32.totalorder %v36, 0
  %v38 = vand.u32 %v35, 2
  %vm39 = vcmp.ne.s32.totalorder %v38, 0
  %v40 = vand.u32 %v35, 4
  %vm41 = vcmp.ne.s32.totalorder %v40, 0
  %v42 = vand.u32 %v35, 8
  %vm43 = vcmp.ne.s32.totalorder %v42, 0
  %v44 = vand.u32 %v35, 16
  %vm45 = vcmp.ne.s32.totalorder %v44, 0
  %v46 = vand.u32 %v35, 32
  %vm47 = vcmp.ne.s32.totalorder %v46, 0
  %v48 = vand.u32 %v35, 64
  %vm49 = vcmp.ne.s32.totalorder %v48, 0
  %v50 = vand.u32 %v35, 128
  %vm51 = vcmp.ne.s32.totalorder %v50, 0
  %52 = vst [vmem:[#allocation2] sm:$0xf] 0
  %53 = vst [vmem:[#allocation2 + $0x14] sm:$0xf] 0
  %v54 = vld [vmem:[%s0] sm:$0xf]
  %v57 = vunpack.c.l.s4 1935823168
  %v58 = vunpack.c.0.s8 %v57
  %v59 = vlaneseq
  %v60 = vshrl.u32 %v59, 7
  %v61 = vsub.s32 %v58, %v60
  %v62 = vrot.slane %v54, %v61
  %v63 = vcombine.high %v62, %v62
  %v65 = vunpack.c.l.s4 1935823168
  %v66 = vunpack.c.0.s8 %v65
  %v67 = vlaneseq
  %v68 = vshrl.u32 %v67, 7
  %v69 = vsub.s32 %v66, %v68
  %v70 = vrot.slane %v62, %v69
  %v72 = vunpack.c.l.s4 1935823168
  %v73 = vunpack.c.0.s8 %v72
  %v74 = vlaneseq
  %v75 = vshrl.u32 %v74, 7
  %v76 = vsub.s32 %v73, %v75
  %v77 = vrot.slane %v63, %v76
  %80 = vst [vmem:[#allocation2 + $0x4] sm:$0x11] %v70
  %81 = vst [vmem:[#allocation2 + $0xc] sm:$0x11] %v77
  %v82 = vld [vmem:[%s1] sm:$0xf]
  %v85 = vunpack.c.l.s4 1935823168
  %v86 = vunpack.c.0.s8 %v85
  %v87 = vlaneseq
  %v88 = vshrl.u32 %v87, 7
  %v89 = vsub.s32 %v86, %v88
  %v90 = vrot.slane %v82, %v89
  %v91 = vcombine.low %v90, %v90
  %v93 = vunpack.c.l.s4 1935823168
  %v94 = vunpack.c.0.s8 %v93
  %v95 = vlaneseq
  %v96 = vshrl.u32 %v95, 7
  %v97 = vsub.s32 %v94, %v96
  %v98 = vrot.slane %v91, %v97
  %v100 = vunpack.c.l.s4 1935823168
  %v101 = vunpack.c.0.s8 %v100
  %v102 = vlaneseq
  %v103 = vshrl.u32 %v102, 7
  %v104 = vsub.s32 %v101, %v103
  %v105 = vrot.slane %v90, %v104
  %108 = vst [vmem:[#allocation2 + $0x4] sm:$0x22] %v98
  %109 = vst [vmem:[#allocation2 + $0xc] sm:$0x22] %v105
  %110 = vst [vmem:[#allocation2 + $0x4] sm:$0xcc] 0
  %111 = vst [vmem:[#allocation2 + $0xc] sm:$0xcc] 0
  %v112 = vld [vmem:[#allocation2] sm:$0xff]
  %v113 = vld [vmem:[#allocation2 + $0x8] sm:$0xff]
  %v114 = vld [vmem:[#allocation2 + $0x10] sm:$0xf]
  %v115 = vsel %vm37, 1, 0
  %v116 = vlaneseq
  %v117 = vshrl.u32 %v116, 7
  %v118 = vsub.s32 0, %v117
  %v119 = vrot.slane %v115, %v118
  %v120 = vlaneseq
  %v121 = vshrl.u32 %v120, 7
  %v122 = vsub.s32 1, %v121
  %v123 = vrot.slane %v115, %v122
  %v124 = vlaneseq
  %v125 = vshrl.u32 %v124, 7
  %v126 = vsub.s32 2, %v125
  %v127 = vrot.slane %v115, %v126
  %v128 = vlaneseq
  %v129 = vshrl.u32 %v128, 7
  %v130 = vsub.s32 3, %v129
  %v131 = vrot.slane %v115, %v130
  %vm132 = vcmp.eq.s32.totalorder %v119, 1
  %vm133 = vcmp.eq.s32.totalorder %v123, 1
  %vm134 = vcmp.eq.s32.totalorder %v127, 1
  %vm135 = vcmp.eq.s32.totalorder %v131, 1
  %vm136 = vmpackc.low %vm133, %vm132
  %vm137 = vmpackc.low %vm135, %vm134
  %v138 = vsel %vm136, 65537, 0
  %v139 = vsel %vm137, 65537, 0
  %140 = vrot.lane.b32.xlu0 %v138, 111
  %v141 = vpop.permute.xlu0 %140
  %142 = vrot.lane.b32.xlu0 %v139, 111
  %v143 = vpop.permute.xlu0 %142
  %v144 = vrot.slane %v141, 4
  %v145 = vrot.slane %v143, 4
  %vm146 = vcmask 908288
  %v147 = vsel %vm146, %v144, %v141
  %vm148 = vcmask 1043456
  %v149 = vsel %vm148, %v144, %v145
  %v150 = vsel %vm146, %v149, %v143
  %vm151 = vcmp.ne.s16.totalorder %v147, 0
  %vm152 = vcmp.ne.s16.totalorder %v150, 0
  %vm153 = vcmp.ne.s16.totalorder %v145, 0
  %v154 = vsel %vm151, %v112, 0
  %v155 = vsel %vm152, %v113, 0
  %v156 = vsel %vm153, %v114, 0
  %v157 = vsel %vm39, 1, 0
  %v158 = vlaneseq
  %v159 = vshrl.u32 %v158, 7
  %v160 = vsub.s32 0, %v159
  %v161 = vrot.slane %v157, %v160
  %v162 = vlaneseq
  %v163 = vshrl.u32 %v162, 7
  %v164 = vsub.s32 1, %v163
  %v165 = vrot.slane %v157, %v164
  %v166 = vlaneseq
  %v167 = vshrl.u32 %v166, 7
  %v168 = vsub.s32 2, %v167
  %v169 = vrot.slane %v157, %v168
  %v170 = vlaneseq
  %v171 = vshrl.u32 %v170, 7
  %v172 = vsub.s32 3, %v171
  %v173 = vrot.slane %v157, %v172
  %vm174 = vcmp.eq.s32.totalorder %v161, 1
  %vm175 = vcmp.eq.s32.totalorder %v165, 1
  %vm176 = vcmp.eq.s32.totalorder %v169, 1
  %vm177 = vcmp.eq.s32.totalorder %v173, 1
  %vm178 = vmpackc.low %vm175, %vm174
  %vm179 = vmpackc.low %vm177, %vm176
  %v180 = vsel %vm178, 65537, 0
  %v181 = vsel %vm179, 65537, 0
  %182 = vrot.lane.b32.xlu0 %v180, 112
  %v183 = vpop.permute.xlu0 %182
  %184 = vrot.lane.b32.xlu0 %v181, 112
  %v185 = vpop.permute.xlu0 %184
  %v186 = vrot.slane %v183, 4
  %v187 = vrot.slane %v185, 4
  %vm188 = vcmask 916480
  %v189 = vsel %vm188, %v186, %v183
  %v190 = vsel %vm148, %v186, %v187
  %v191 = vsel %vm188, %v190, %v185
  %vm192 = vcmp.ne.s16.totalorder %v189, 0
  %vm193 = vcmp.ne.s16.totalorder %v191, 0
  %vm194 = vcmp.ne.s16.totalorder %v187, 0
  %v195 = vsel %vm192, %v112, 0
  %v196 = vsel %vm193, %v113, 0
  %v197 = vsel %vm194, %v114, 0
  %v198 = vsel %vm41, 1, 0
  %v199 = vlaneseq
  %v200 = vshrl.u32 %v199, 7
  %v201 = vsub.s32 0, %v200
  %v202 = vrot.slane %v198, %v201
  %v203 = vlaneseq
  %v204 = vshrl.u32 %v203, 7
  %v205 = vsub.s32 1, %v204
  %v206 = vrot.slane %v198, %v205
  %v207 = vlaneseq
  %v208 = vshrl.u32 %v207, 7
  %v209 = vsub.s32 2, %v208
  %v210 = vrot.slane %v198, %v209
  %v211 = vlaneseq
  %v212 = vshrl.u32 %v211, 7
  %v213 = vsub.s32 3, %v212
  %v214 = vrot.slane %v198, %v213
  %vm215 = vcmp.eq.s32.totalorder %v202, 1
  %vm216 = vcmp.eq.s32.totalorder %v206, 1
  %vm217 = vcmp.eq.s32.totalorder %v210, 1
  %vm218 = vcmp.eq.s32.totalorder %v214, 1
  %vm219 = vmpackc.low %vm216, %vm215
  %vm220 = vmpackc.low %vm218, %vm217
  %v221 = vsel %vm219, 65537, 0
  %v222 = vsel %vm220, 65537, 0
  %223 = vrot.lane.b32.xlu0 %v221, 113
  %v224 = vpop.permute.xlu0 %223
  %225 = vrot.lane.b32.xlu0 %v222, 113
  %v226 = vpop.permute.xlu0 %225
  %v227 = vrot.slane %v224, 4
  %v228 = vrot.slane %v226, 4
  %vm229 = vcmask 924672
  %v230 = vsel %vm229, %v227, %v224
  %v231 = vsel %vm148, %v227, %v228
  %v232 = vsel %vm229, %v231, %v226
  %vm233 = vcmp.ne.s16.totalorder %v230, 0
  %vm234 = vcmp.ne.s16.totalorder %v232, 0
  %vm235 = vcmp.ne.s16.totalorder %v228, 0
  %v236 = vsel %vm233, %v112, 0
  %v237 = vsel %vm234, %v113, 0
  %v238 = vsel %vm235, %v114, 0
  %v242 = vunpack.c.l.b16 %v154
  %v243 = vunpack.c.h.b16 %v154
  %v244 = vunpack.c.l.b16 %v155
  %v245 = vunpack.c.h.b16 %v155
  %v246 = vunpack.c.l.b16 %v156
  %v247 = vpack.c.b16 %v242, %v242
  %v248 = vpack.c.b16 %v243, %v243
  %v249 = vpack.c.b16 %v244, %v244
  %v250 = vpack.c.b16 %v245, %v245
  %v251 = vpack.c.b16 %v246, %v246
  %v255 = vunpack.c.l.b16 %v195
  %v256 = vunpack.c.h.b16 %v195
  %v257 = vunpack.c.l.b16 %v196
  %v258 = vunpack.c.h.b16 %v196
  %v259 = vunpack.c.l.b16 %v197
  %v260 = vpack.c.b16 %v255, %v255
  %v261 = vpack.c.b16 %v256, %v256
  %v262 = vpack.c.b16 %v257, %v257
  %v263 = vpack.c.b16 %v258, %v258
  %v264 = vpack.c.b16 %v259, %v259
  %265 = vrot.lane.b32.xlu0 %v260, 127
  %v266 = vpop.permute.xlu0 %265
  %267 = vrot.lane.b32.xlu0 %v261, 127
  %v268 = vpop.permute.xlu0 %267
  %269 = vrot.lane.b32.xlu0 %v262, 127
  %v270 = vpop.permute.xlu0 %269
  %271 = vrot.lane.b32.xlu0 %v263, 127
  %v272 = vpop.permute.xlu0 %271
  %273 = vrot.lane.b32.xlu0 %v264, 127
  %v274 = vpop.permute.xlu0 %273
  %vm275 = vcmask 1039360
  %v276 = vsel %vm275, %v266, %v268
  %v277 = vsel %vm275, %v268, %v270
  %v278 = vsel %vm275, %v270, %v272
  %v279 = vsel %vm275, %v272, %v274
  %v283 = vunpack.c.l.b16 %v236
  %v284 = vunpack.c.h.b16 %v236
  %v285 = vunpack.c.l.b16 %v237
  %v286 = vunpack.c.h.b16 %v237
  %v287 = vunpack.c.l.b16 %v238
  %v288 = vpack.c.b16 %v283, %v283
  %v289 = vpack.c.b16 %v284, %v284
  %v290 = vpack.c.b16 %v285, %v285
  %v291 = vpack.c.b16 %v286, %v286
  %v292 = vpack.c.b16 %v287, %v287
  %293 = vrot.lane.b32.xlu0 %v288, 126
  %v294 = vpop.permute.xlu0 %293
  %295 = vrot.lane.b32.xlu0 %v289, 126
  %v296 = vpop.permute.xlu0 %295
  %297 = vrot.lane.b32.xlu0 %v290, 126
  %v298 = vpop.permute.xlu0 %297
  %299 = vrot.lane.b32.xlu0 %v291, 126
  %v300 = vpop.permute.xlu0 %299
  %301 = vrot.lane.b32.xlu0 %v292, 126
  %v302 = vpop.permute.xlu0 %301
  %vm303 = vcmask 1031168
  %v304 = vsel %vm303, %v294, %v296
  %v305 = vsel %vm303, %v296, %v298
  %v306 = vsel %vm303, %v298, %v300
  %v307 = vsel %vm303, %v300, %v302
  %vm308 = vcmask 1043456
  %v311 = vsel %vm308, %v247, %v276
  %v314 = vsel %vm308, %v248, %v277
  %v317 = vsel %vm308, %v249, %v278
  %v320 = vsel %vm308, %v250, %v279
  %v323 = vsel %vm308, %v251, %v274
  %v324 = vld [vmem:[%s3] sm:$0xf]
  %v325 = vsel %vm43, 1, 0
  %v326 = vlaneseq
  %v327 = vshrl.u32 %v326, 7
  %v328 = vsub.s32 0, %v327
  %v329 = vrot.slane %v325, %v328
  %v330 = vlaneseq
  %v331 = vshrl.u32 %v330, 7
  %v332 = vsub.s32 1, %v331
  %v333 = vrot.slane %v325, %v332
  %v334 = vlaneseq
  %v335 = vshrl.u32 %v334, 7
  %v336 = vsub.s32 2, %v335
  %v337 = vrot.slane %v325, %v336
  %v338 = vlaneseq
  %v339 = vshrl.u32 %v338, 7
  %v340 = vsub.s32 3, %v339
  %v341 = vrot.slane %v325, %v340
  %vm342 = vcmp.eq.s32.totalorder %v329, 1
  %vm343 = vcmp.eq.s32.totalorder %v333, 1
  %vm344 = vcmp.eq.s32.totalorder %v337, 1
  %vm345 = vcmp.eq.s32.totalorder %v341, 1
  %vm346 = vmpackc.low %vm343, %vm342
  %vm347 = vmpackc.low %vm345, %vm344
  %v348 = vsel %vm346, 65537, 0
  %v349 = vsel %vm347, 65537, 0
  %350 = vrot.lane.b32.xlu0 %v348, 127
  %v351 = vpop.permute.xlu0 %350
  %352 = vrot.lane.b32.xlu0 %v349, 127
  %v353 = vpop.permute.xlu0 %352
  %v354 = vrot.slane %v351, 4
  %v355 = vrot.slane %v353, 4
  %v356 = vsel %vm275, %v354, %v351
  %v357 = vsel %vm148, %v354, %v355
  %v358 = vsel %vm275, %v357, %v353
  %vm359 = vcmp.ne.s16.totalorder %v356, 0
  %vm360 = vcmp.ne.s16.totalorder %v358, 0
  %vm361 = vcmp.ne.s16.totalorder %v355, 0
  %v362 = vsel %vm359, %v112, 0
  %v363 = vsel %vm360, %v113, 0
  %v364 = vsel %vm361, %v114, 0
  %v365 = vld [vmem:[#allocation2 + $0x4] sm:$0xff]
  %v366 = vld [vmem:[#allocation2 + $0xc] sm:$0xff]
  %v367 = vld [vmem:[#allocation2 + $0x4] sm:$0xff]
  %v368 = vld [vmem:[#allocation2 + $0xc] sm:$0xff]
  %v369 = vld [vmem:[#allocation2 + $0x14] sm:$0xf]
  %v370 = vsel %vm45, 1, 0
  %v371 = vlaneseq
  %v372 = vshrl.u32 %v371, 7
  %v373 = vsub.s32 0, %v372
  %v374 = vrot.slane %v370, %v373
  %v375 = vlaneseq
  %v376 = vshrl.u32 %v375, 7
  %v377 = vsub.s32 1, %v376
  %v378 = vrot.slane %v370, %v377
  %v379 = vlaneseq
  %v380 = vshrl.u32 %v379, 7
  %v381 = vsub.s32 2, %v380
  %v382 = vrot.slane %v370, %v381
  %v383 = vlaneseq
  %v384 = vshrl.u32 %v383, 7
  %v385 = vsub.s32 3, %v384
  %v386 = vrot.slane %v370, %v385
  %vm387 = vcmp.eq.s32.totalorder %v374, 1
  %vm388 = vcmp.eq.s32.totalorder %v378, 1
  %vm389 = vcmp.eq.s32.totalorder %v382, 1
  %vm390 = vcmp.eq.s32.totalorder %v386, 1
  %vm391 = vmpackc.low %vm388, %vm387
  %vm392 = vmpackc.low %vm390, %vm389
  %v393 = vsel %vm391, 65537, 0
  %v394 = vsel %vm392, 65537, 0
  %395 = vrot.lane.b32.xlu0 %v393, 1
  %v396 = vpop.permute.xlu0 %395
  %397 = vrot.lane.b32.xlu0 %v394, 1
  %v398 = vpop.permute.xlu0 %397
  %v399 = vrot.slane %v396, 4
  %v400 = vrot.slane %v398, 4
  %vm401 = vcmask 7168
  %v402 = vsel %vm401, %v399, %v396
  %v403 = vsel %vm148, %v399, %v400
  %v404 = vsel %vm401, %v403, %v398
  %vm405 = vcmp.ne.s16.totalorder %v402, 0
  %vm406 = vcmp.ne.s16.totalorder %v404, 0
  %vm407 = vcmp.ne.s16.totalorder %v400, 0
  %v408 = vsel %vm405, %v367, 0
  %v409 = vsel %vm406, %v368, 0
  %v410 = vsel %vm407, %v369, 0
  %v414 = vunpack.c.l.b16 %v362
  %v415 = vunpack.c.h.b16 %v362
  %v416 = vunpack.c.l.b16 %v363
  %v417 = vunpack.c.h.b16 %v363
  %v418 = vunpack.c.l.b16 %v364
  %v419 = vpack.c.b16 %v414, %v414
  %v420 = vpack.c.b16 %v415, %v415
  %v421 = vpack.c.b16 %v416, %v416
  %v422 = vpack.c.b16 %v417, %v417
  %v423 = vpack.c.b16 %v418, %v418
  %v426 = vunpack.c.l.b16 %v365
  %v427 = vunpack.c.h.b16 %v365
  %v428 = vunpack.c.l.b16 %v366
  %v429 = vunpack.c.h.b16 %v366
  %v430 = vpack.c.b16 %v426, %v426
  %v431 = vpack.c.b16 %v427, %v427
  %v432 = vpack.c.b16 %v428, %v428
  %v433 = vpack.c.b16 %v429, %v429
  %434 = vrot.lane.b32.xlu0 %v430, 127
  %v435 = vpop.permute.xlu0 %434
  %436 = vrot.lane.b32.xlu0 %v431, 127
  %v437 = vpop.permute.xlu0 %436
  %438 = vrot.lane.b32.xlu0 %v432, 127
  %v439 = vpop.permute.xlu0 %438
  %440 = vrot.lane.b32.xlu0 %v433, 127
  %v441 = vpop.permute.xlu0 %440
  %v442 = vsel %vm275, %v435, %v437
  %v443 = vsel %vm275, %v437, %v439
  %v444 = vsel %vm275, %v439, %v441
  %v448 = vunpack.c.l.b16 %v408
  %v449 = vunpack.c.h.b16 %v408
  %v450 = vunpack.c.l.b16 %v409
  %v451 = vunpack.c.h.b16 %v409
  %v452 = vunpack.c.l.b16 %v410
  %v453 = vpack.c.b16 %v448, %v448
  %v454 = vpack.c.b16 %v449, %v449
  %v455 = vpack.c.b16 %v450, %v450
  %v456 = vpack.c.b16 %v451, %v451
  %v457 = vpack.c.b16 %v452, %v452
  %458 = vrot.lane.b32.xlu0 %v453, 126
  %v459 = vpop.permute.xlu0 %458
  %460 = vrot.lane.b32.xlu0 %v454, 126
  %v461 = vpop.permute.xlu0 %460
  %462 = vrot.lane.b32.xlu0 %v455, 126
  %v463 = vpop.permute.xlu0 %462
  %464 = vrot.lane.b32.xlu0 %v456, 126
  %v465 = vpop.permute.xlu0 %464
  %466 = vrot.lane.b32.xlu0 %v457, 126
  %v467 = vpop.permute.xlu0 %466
  %v468 = vsel %vm303, %v459, %v461
  %v469 = vsel %vm303, %v461, %v463
  %v470 = vsel %vm303, %v463, %v465
  %v471 = vsel %vm303, %v465, %v467
  %v474 = vsel %vm308, %v419, %v435
  %v477 = vsel %vm308, %v420, %v442
  %v480 = vsel %vm308, %v421, %v443
  %v483 = vsel %vm308, %v422, %v444
  %v486 = vsel %vm308, %v423, %v441
  %v487 = vld [vmem:[%s3 + $0x4] sm:$0xf]
  %493 = vrot.lane.b32.xlu0 %v474, 1
  %v494 = vpop.permute.xlu0 %493
  %495 = vrot.lane.b32.xlu0 %v477, 1
  %v496 = vpop.permute.xlu0 %495
  %497 = vrot.lane.b32.xlu0 %v480, 1
  %v498 = vpop.permute.xlu0 %497
  %499 = vrot.lane.b32.xlu0 %v483, 1
  %v500 = vpop.permute.xlu0 %499
  %501 = vrot.lane.b32.xlu0 %v486, 1
  %v502 = vpop.permute.xlu0 %501
  %503 = vrot.lane.b32.xlu0 %v459, 1
  %v504 = vpop.permute.xlu0 %503
  %505 = vrot.lane.b32.xlu0 %v468, 1
  %v506 = vpop.permute.xlu0 %505
  %507 = vrot.lane.b32.xlu0 %v469, 1
  %v508 = vpop.permute.xlu0 %507
  %509 = vrot.lane.b32.xlu0 %v470, 1
  %v510 = vpop.permute.xlu0 %509
  %511 = vrot.lane.b32.xlu0 %v471, 1
  %v512 = vpop.permute.xlu0 %511
  %v513 = vsel %vm401, %v494, %v496
  %v514 = vsel %vm401, %v496, %v498
  %v515 = vsel %vm401, %v498, %v500
  %v516 = vsel %vm401, %v500, %v502
  %v517 = vsel %vm401, %v504, %v506
  %v518 = vsel %vm401, %v506, %v508
  %v519 = vsel %vm401, %v508, %v510
  %v520 = vsel %vm401, %v510, %v512
  %vm525 = vcmask 195584
  %v527 = vsel %vm525, %v487, 0
  %v530 = vsel %vm308, %v517, 0
  %v533 = vsel %vm308, %v518, 0
  %v536 = vsel %vm308, %v519, 0
  %v539 = vsel %vm308, %v520, 0
  %541 = vmatprep.subr.bf16.mxu0 %v514
  %542 = vmatpush1.bf16.msra.mxu0 %v513
  %543 = vmatprep.subr.bf16.mxu0 %v533
  %544 = vmatpush1.bf16.msra.mxu0 %v530
  %545 = vmatprep.subr.bf16.mxu0 0
  %546 = vmatpush1.bf16.msra.mxu0 0
  %547 = vmatprep.subr.bf16.mxu0 0
  %548 = vmatpush1.bf16.msra.mxu0 0
  %549 = vmatprep.subr.bf16.mxu0 0
  %550 = vmatpush1.bf16.msra.mxu0 0
  %551 = vmatprep.subr.bf16.mxu0 0
  %552 = vmatpush1.bf16.msra.mxu0 0
  %553 = vmatprep.subr.bf16.mxu0 0
  %554 = vmatpush1.bf16.msra.mxu0 0
  %555 = vmatprep.subr.bf16.mxu0 0
  %556 = vmatpush1.bf16.msra.mxu0 0
  %557 = vmatprep.subr.bf16.mxu0 0
  %558 = vmatpush1.bf16.msra.mxu0 0
  %559 = vmatprep.subr.bf16.mxu0 0
  %560 = vmatpush1.bf16.msra.mxu0 0
  %561 = vmatprep.subr.bf16.mxu0 0
  %562 = vmatpush1.bf16.msra.mxu0 0
  %563 = vmatprep.subr.bf16.mxu0 0
  %564 = vmatpush1.bf16.msra.mxu0 0
  %565 = vmatprep.subr.bf16.mxu0 0
  %566 = vmatpush1.bf16.msra.mxu0 0
  %567 = vmatprep.subr.bf16.mxu0 0
  %568 = vmatpush1.bf16.msra.mxu0 0
  %569 = vmatprep.subr.bf16.mxu0 0
  %570 = vmatpush1.bf16.msra.mxu0 0
  %571 = vmatprep.subr.bf16.mxu0 0
  %572 = vmatpush1.bf16.msra.mxu0 0
  %573 = vmatprep.mubr.bf16.mxu0 0
  %574 = vmatmul.mubr.bf16.gmra.mrb[0].mxu0 %v527
  %v575 = vpop.f32.mrb[0].mxu0
  %v576 = vadd.f32 0.0, %v575
  %v577 = vpop.f32.mrb[0].mxu0
  %v578 = vadd.f32 0.0, %v577
  %v579 = vpop.f32.mrb[0].mxu0
  %v580 = vpop.f32.mrb[0].mxu0
  %581 = vdwg.mxu0
  %582 = vmatprep.subr.bf16.mxu0 %v516
  %583 = vmatpush1.bf16.msra.mxu0 %v515
  %584 = vmatprep.subr.bf16.mxu0 %v539
  %585 = vmatpush1.bf16.msra.mxu0 %v536
  %586 = vmatprep.subr.bf16.mxu0 0
  %587 = vmatpush1.bf16.msra.mxu0 0
  %588 = vmatprep.subr.bf16.mxu0 0
  %589 = vmatpush1.bf16.msra.mxu0 0
  %590 = vmatprep.subr.bf16.mxu0 0
  %591 = vmatpush1.bf16.msra.mxu0 0
  %592 = vmatprep.subr.bf16.mxu0 0
  %593 = vmatpush1.bf16.msra.mxu0 0
  %594 = vmatprep.subr.bf16.mxu0 0
  %595 = vmatpush1.bf16.msra.mxu0 0
  %596 = vmatprep.subr.bf16.mxu0 0
  %597 = vmatpush1.bf16.msra.mxu0 0
  %598 = vmatprep.subr.bf16.mxu0 0
  %599 = vmatpush1.bf16.msra.mxu0 0
  %600 = vmatprep.subr.bf16.mxu0 0
  %601 = vmatpush1.bf16.msra.mxu0 0
  %602 = vmatprep.subr.bf16.mxu0 0
  %603 = vmatpush1.bf16.msra.mxu0 0
  %604 = vmatprep.subr.bf16.mxu0 0
  %605 = vmatpush1.bf16.msra.mxu0 0
  %606 = vmatprep.subr.bf16.mxu0 0
  %607 = vmatpush1.bf16.msra.mxu0 0
  %608 = vmatprep.subr.bf16.mxu0 0
  %609 = vmatpush1.bf16.msra.mxu0 0
  %610 = vmatprep.subr.bf16.mxu0 0
  %611 = vmatpush1.bf16.msra.mxu0 0
  %612 = vmatprep.subr.bf16.mxu0 0
  %613 = vmatpush1.bf16.msra.mxu0 0
  %614 = vmatprep.mubr.bf16.mxu0 0
  %615 = vmatmul.mubr.bf16.gmra.mrb[0].mxu0 %v527
  %v616 = vpop.f32.mrb[0].mxu0
  %v617 = vadd.f32 0.0, %v616
  %v618 = vpop.f32.mrb[0].mxu0
  %v619 = vadd.f32 0.0, %v618
  %v620 = vpop.f32.mrb[0].mxu0
  %v621 = vpop.f32.mrb[0].mxu0
  %622 = vdwg.mxu0
  %628 = vrot.lane.b32.xlu0 %v311, 17
  %v629 = vpop.permute.xlu0 %628
  %630 = vrot.lane.b32.xlu0 %v314, 17
  %v631 = vpop.permute.xlu0 %630
  %632 = vrot.lane.b32.xlu0 %v317, 17
  %v633 = vpop.permute.xlu0 %632
  %634 = vrot.lane.b32.xlu0 %v320, 17
  %v635 = vpop.permute.xlu0 %634
  %636 = vrot.lane.b32.xlu0 %v323, 17
  %v637 = vpop.permute.xlu0 %636
  %638 = vrot.lane.b32.xlu0 %v304, 17
  %v639 = vpop.permute.xlu0 %638
  %640 = vrot.lane.b32.xlu0 %v305, 17
  %v641 = vpop.permute.xlu0 %640
  %642 = vrot.lane.b32.xlu0 %v306, 17
  %v643 = vpop.permute.xlu0 %642
  %644 = vrot.lane.b32.xlu0 %v307, 17
  %v645 = vpop.permute.xlu0 %644
  %646 = vrot.lane.b32.xlu0 %v302, 17
  %v647 = vpop.permute.xlu0 %646
  %vm648 = vcmask 138240
  %v649 = vsel %vm648, %v629, %v631
  %v650 = vsel %vm648, %v631, %v633
  %v651 = vsel %vm648, %v633, %v635
  %v652 = vsel %vm648, %v635, %v637
  %v653 = vsel %vm648, %v639, %v641
  %v654 = vsel %vm648, %v641, %v643
  %v655 = vsel %vm648, %v643, %v645
  %v656 = vsel %vm648, %v645, %v647
  %v662 = vsel %vm525, %v324, 0
  %v665 = vsel %vm308, %v653, 0
  %v668 = vsel %vm308, %v654, 0
  %v671 = vsel %vm308, %v655, 0
  %v674 = vsel %vm308, %v656, 0
  %676 = vmatprep.subr.bf16.mxu0 %v650
  %677 = vmatpush1.bf16.msra.mxu0 %v649
  %678 = vmatprep.subr.bf16.mxu0 %v668
  %679 = vmatpush1.bf16.msra.mxu0 %v665
  %680 = vmatprep.subr.bf16.mxu0 0
  %681 = vmatpush1.bf16.msra.mxu0 0
  %682 = vmatprep.subr.bf16.mxu0 0
  %683 = vmatpush1.bf16.msra.mxu0 0
  %684 = vmatprep.subr.bf16.mxu0 0
  %685 = vmatpush1.bf16.msra.mxu0 0
  %686 = vmatprep.subr.bf16.mxu0 0
  %687 = vmatpush1.bf16.msra.mxu0 0
  %688 = vmatprep.subr.bf16.mxu0 0
  %689 = vmatpush1.bf16.msra.mxu0 0
  %690 = vmatprep.subr.bf16.mxu0 0
  %691 = vmatpush1.bf16.msra.mxu0 0
  %692 = vmatprep.subr.bf16.mxu0 0
  %693 = vmatpush1.bf16.msra.mxu0 0
  %694 = vmatprep.subr.bf16.mxu0 0
  %695 = vmatpush1.bf16.msra.mxu0 0
  %696 = vmatprep.subr.bf16.mxu0 0
  %697 = vmatpush1.bf16.msra.mxu0 0
  %698 = vmatprep.subr.bf16.mxu0 0
  %699 = vmatpush1.bf16.msra.mxu0 0
  %700 = vmatprep.subr.bf16.mxu0 0
  %701 = vmatpush1.bf16.msra.mxu0 0
  %702 = vmatprep.subr.bf16.mxu0 0
  %703 = vmatpush1.bf16.msra.mxu0 0
  %704 = vmatprep.subr.bf16.mxu0 0
  %705 = vmatpush1.bf16.msra.mxu0 0
  %706 = vmatprep.subr.bf16.mxu0 0
  %707 = vmatpush1.bf16.msra.mxu0 0
  %708 = vmatprep.mubr.bf16.mxu0 0
  %709 = vmatmul.mubr.bf16.gmra.mrb[0].mxu0 %v662
  %v710 = vpop.f32.mrb[0].mxu0
  %v711 = vadd.f32 %v576, %v710
  %v712 = vpop.f32.mrb[0].mxu0
  %v713 = vadd.f32 %v578, %v712
  %v714 = vpop.f32.mrb[0].mxu0
  %v715 = vpop.f32.mrb[0].mxu0
  %716 = vdwg.mxu0
  %717 = vmatprep.subr.bf16.mxu0 %v652
  %718 = vmatpush1.bf16.msra.mxu0 %v651
  %719 = vmatprep.subr.bf16.mxu0 %v674
  %720 = vmatpush1.bf16.msra.mxu0 %v671
  %721 = vmatprep.subr.bf16.mxu0 0
  %722 = vmatpush1.bf16.msra.mxu0 0
  %723 = vmatprep.subr.bf16.mxu0 0
  %724 = vmatpush1.bf16.msra.mxu0 0
  %725 = vmatprep.subr.bf16.mxu0 0
  %726 = vmatpush1.bf16.msra.mxu0 0
  %727 = vmatprep.subr.bf16.mxu0 0
  %728 = vmatpush1.bf16.msra.mxu0 0
  %729 = vmatprep.subr.bf16.mxu0 0
  %730 = vmatpush1.bf16.msra.mxu0 0
  %731 = vmatprep.subr.bf16.mxu0 0
  %732 = vmatpush1.bf16.msra.mxu0 0
  %733 = vmatprep.subr.bf16.mxu0 0
  %734 = vmatpush1.bf16.msra.mxu0 0
  %735 = vmatprep.subr.bf16.mxu0 0
  %736 = vmatpush1.bf16.msra.mxu0 0
  %737 = vmatprep.subr.bf16.mxu0 0
  %738 = vmatpush1.bf16.msra.mxu0 0
  %739 = vmatprep.subr.bf16.mxu0 0
  %740 = vmatpush1.bf16.msra.mxu0 0
  %741 = vmatprep.subr.bf16.mxu0 0
  %742 = vmatpush1.bf16.msra.mxu0 0
  %743 = vmatprep.subr.bf16.mxu0 0
  %744 = vmatpush1.bf16.msra.mxu0 0
  %745 = vmatprep.subr.bf16.mxu0 0
  %746 = vmatpush1.bf16.msra.mxu0 0
  %747 = vmatprep.subr.bf16.mxu0 0
  %748 = vmatpush1.bf16.msra.mxu0 0
  %749 = vmatprep.mubr.bf16.mxu0 0
  %750 = vmatmul.mubr.bf16.gmra.mrb[0].mxu0 %v662
  %v751 = vpop.f32.mrb[0].mxu0
  %v752 = vadd.f32 %v617, %v751
  %v753 = vpop.f32.mrb[0].mxu0
  %v754 = vadd.f32 %v619, %v753
  %v755 = vpop.f32.mrb[0].mxu0
  %v756 = vpop.f32.mrb[0].mxu0
  %757 = vdwg.mxu0
  %v758 = vsel %vm47, 1, 0
  %v759 = vlaneseq
  %v760 = vshrl.u32 %v759, 7
  %v761 = vsub.s32 0, %v760
  %v762 = vrot.slane %v758, %v761
  %v763 = vlaneseq
  %v764 = vshrl.u32 %v763, 7
  %v765 = vsub.s32 1, %v764
  %v766 = vrot.slane %v758, %v765
  %v767 = vlaneseq
  %v768 = vshrl.u32 %v767, 7
  %v769 = vsub.s32 2, %v768
  %v770 = vrot.slane %v758, %v769
  %v771 = vlaneseq
  %v772 = vshrl.u32 %v771, 7
  %v773 = vsub.s32 3, %v772
  %v774 = vrot.slane %v758, %v773
  %vm775 = vcmp.eq.s32.totalorder %v762, 1
  %vm776 = vcmp.eq.s32.totalorder %v766, 1
  %vm777 = vcmp.eq.s32.totalorder %v770, 1
  %vm778 = vcmp.eq.s32.totalorder %v774, 1
  %vm779 = vmpackc.low %vm776, %vm775
  %vm780 = vmpackc.low %vm778, %vm777
  %v781 = vsel %vm779, 65537, 0
  %v782 = vsel %vm780, 65537, 0
  %783 = vrot.lane.b32.xlu0 %v781, 15
  %v784 = vpop.permute.xlu0 %783
  %785 = vrot.lane.b32.xlu0 %v782, 15
  %v786 = vpop.permute.xlu0 %785
  %v787 = vrot.slane %v784, 4
  %v788 = vrot.slane %v786, 4
  %vm789 = vcmask 121856
  %v790 = vsel %vm789, %v787, %v784
  %v791 = vsel %vm148, %v787, %v788
  %v792 = vsel %vm789, %v791, %v786
  %vm793 = vcmp.ne.s16.totalorder %v790, 0
  %vm794 = vcmp.ne.s16.totalorder %v792, 0
  %vm795 = vcmp.ne.s16.totalorder %v788, 0
  %v796 = vsel %vm793, %v367, 0
  %v797 = vsel %vm794, %v368, 0
  %v798 = vsel %vm795, %v369, 0
  %v799 = vsel %vm49, 1, 0
  %v800 = vlaneseq
  %v801 = vshrl.u32 %v800, 7
  %v802 = vsub.s32 0, %v801
  %v803 = vrot.slane %v799, %v802
  %v804 = vlaneseq
  %v805 = vshrl.u32 %v804, 7
  %v806 = vsub.s32 1, %v805
  %v807 = vrot.slane %v799, %v806
  %v808 = vlaneseq
  %v809 = vshrl.u32 %v808, 7
  %v810 = vsub.s32 2, %v809
  %v811 = vrot.slane %v799, %v810
  %v812 = vlaneseq
  %v813 = vshrl.u32 %v812, 7
  %v814 = vsub.s32 3, %v813
  %v815 = vrot.slane %v799, %v814
  %vm816 = vcmp.eq.s32.totalorder %v803, 1
  %vm817 = vcmp.eq.s32.totalorder %v807, 1
  %vm818 = vcmp.eq.s32.totalorder %v811, 1
  %vm819 = vcmp.eq.s32.totalorder %v815, 1
  %vm820 = vmpackc.low %vm817, %vm816
  %vm821 = vmpackc.low %vm819, %vm818
  %v822 = vsel %vm820, 65537, 0
  %v823 = vsel %vm821, 65537, 0
  %824 = vrot.lane.b32.xlu0 %v822, 16
  %v825 = vpop.permute.xlu0 %824
  %826 = vrot.lane.b32.xlu0 %v823, 16
  %v827 = vpop.permute.xlu0 %826
  %v828 = vrot.slane %v825, 4
  %v829 = vrot.slane %v827, 4
  %vm830 = vcmask 130048
  %v831 = vsel %vm830, %v828, %v825
  %v832 = vsel %vm148, %v828, %v829
  %v833 = vsel %vm830, %v832, %v827
  %vm834 = vcmp.ne.s16.totalorder %v831, 0
  %vm835 = vcmp.ne.s16.totalorder %v833, 0
  %vm836 = vcmp.ne.s16.totalorder %v829, 0
  %v837 = vsel %vm834, %v367, 0
  %v838 = vsel %vm835, %v368, 0
  %v839 = vsel %vm836, %v369, 0
  %v840 = vsel %vm51, 1, 0
  %v841 = vlaneseq
  %v842 = vshrl.u32 %v841, 7
  %v843 = vsub.s32 0, %v842
  %v844 = vrot.slane %v840, %v843
  %v845 = vlaneseq
  %v846 = vshrl.u32 %v845, 7
  %v847 = vsub.s32 1, %v846
  %v848 = vrot.slane %v840, %v847
  %v849 = vlaneseq
  %v850 = vshrl.u32 %v849, 7
  %v851 = vsub.s32 2, %v850
  %v852 = vrot.slane %v840, %v851
  %v853 = vlaneseq
  %v854 = vshrl.u32 %v853, 7
  %v855 = vsub.s32 3, %v854
  %v856 = vrot.slane %v840, %v855
  %vm857 = vcmp.eq.s32.totalorder %v844, 1
  %vm858 = vcmp.eq.s32.totalorder %v848, 1
  %vm859 = vcmp.eq.s32.totalorder %v852, 1
  %vm860 = vcmp.eq.s32.totalorder %v856, 1
  %vm861 = vmpackc.low %vm858, %vm857
  %vm862 = vmpackc.low %vm860, %vm859
  %v863 = vsel %vm861, 65537, 0
  %v864 = vsel %vm862, 65537, 0
  %865 = vrot.lane.b32.xlu0 %v863, 17
  %v866 = vpop.permute.xlu0 %865
  %867 = vrot.lane.b32.xlu0 %v864, 17
  %v868 = vpop.permute.xlu0 %867
  %v869 = vrot.slane %v866, 4
  %v870 = vrot.slane %v868, 4
  %v871 = vsel %vm648, %v869, %v866
  %v872 = vsel %vm148, %v869, %v870
  %v873 = vsel %vm648, %v872, %v868
  %vm874 = vcmp.ne.s16.totalorder %v871, 0
  %vm875 = vcmp.ne.s16.totalorder %v873, 0
  %vm876 = vcmp.ne.s16.totalorder %v870, 0
  %v877 = vsel %vm874, %v367, 0
  %v878 = vsel %vm875, %v368, 0
  %v879 = vsel %vm876, %v369, 0
  %v883 = vunpack.c.l.b16 %v796
  %v884 = vunpack.c.h.b16 %v796
  %v885 = vunpack.c.l.b16 %v797
  %v886 = vunpack.c.h.b16 %v797
  %v887 = vunpack.c.l.b16 %v798
  %v888 = vpack.c.b16 %v883, %v883
  %v889 = vpack.c.b16 %v884, %v884
  %v890 = vpack.c.b16 %v885, %v885
  %v891 = vpack.c.b16 %v886, %v886
  %v892 = vpack.c.b16 %v887, %v887
  %v896 = vunpack.c.l.b16 %v837
  %v897 = vunpack.c.h.b16 %v837
  %v898 = vunpack.c.l.b16 %v838
  %v899 = vunpack.c.h.b16 %v838
  %v900 = vunpack.c.l.b16 %v839
  %v901 = vpack.c.b16 %v896, %v896
  %v902 = vpack.c.b16 %v897, %v897
  %v903 = vpack.c.b16 %v898, %v898
  %v904 = vpack.c.b16 %v899, %v899
  %v905 = vpack.c.b16 %v900, %v900
  %906 = vrot.lane.b32.xlu0 %v901, 127
  %v907 = vpop.permute.xlu0 %906
  %908 = vrot.lane.b32.xlu0 %v902, 127
  %v909 = vpop.permute.xlu0 %908
  %910 = vrot.lane.b32.xlu0 %v903, 127
  %v911 = vpop.permute.xlu0 %910
  %912 = vrot.lane.b32.xlu0 %v904, 127
  %v913 = vpop.permute.xlu0 %912
  %914 = vrot.lane.b32.xlu0 %v905, 127
  %v915 = vpop.permute.xlu0 %914
  %v916 = vsel %vm275, %v907, %v909
  %v917 = vsel %vm275, %v909, %v911
  %v918 = vsel %vm275, %v911, %v913
  %v919 = vsel %vm275, %v913, %v915
  %v923 = vunpack.c.l.b16 %v877
  %v924 = vunpack.c.h.b16 %v877
  %v925 = vunpack.c.l.b16 %v878
  %v926 = vunpack.c.h.b16 %v878
  %v927 = vunpack.c.l.b16 %v879
  %v928 = vpack.c.b16 %v923, %v923
  %v929 = vpack.c.b16 %v924, %v924
  %v930 = vpack.c.b16 %v925, %v925
  %v931 = vpack.c.b16 %v926, %v926
  %v932 = vpack.c.b16 %v927, %v927
  %933 = vrot.lane.b32.xlu0 %v928, 126
  %v934 = vpop.permute.xlu0 %933
  %935 = vrot.lane.b32.xlu0 %v929, 126
  %v936 = vpop.permute.xlu0 %935
  %937 = vrot.lane.b32.xlu0 %v930, 126
  %v938 = vpop.permute.xlu0 %937
  %939 = vrot.lane.b32.xlu0 %v931, 126
  %v940 = vpop.permute.xlu0 %939
  %941 = vrot.lane.b32.xlu0 %v932, 126
  %v942 = vpop.permute.xlu0 %941
  %v943 = vsel %vm303, %v934, %v936
  %v944 = vsel %vm303, %v936, %v938
  %v945 = vsel %vm303, %v938, %v940
  %v946 = vsel %vm303, %v940, %v942
  %v949 = vsel %vm308, %v888, %v916
  %v952 = vsel %vm308, %v889, %v917
  %v955 = vsel %vm308, %v890, %v918
  %v958 = vsel %vm308, %v891, %v919
  %v961 = vsel %vm308, %v892, %v915
  %v962 = vld [vmem:[%s3 + $0x8] sm:$0xf]
  %968 = vrot.lane.b32.xlu0 %v949, 113
  %v969 = vpop.permute.xlu0 %968
  %970 = vrot.lane.b32.xlu0 %v952, 113
  %v971 = vpop.permute.xlu0 %970
  %972 = vrot.lane.b32.xlu0 %v955, 113
  %v973 = vpop.permute.xlu0 %972
  %974 = vrot.lane.b32.xlu0 %v958, 113
  %v975 = vpop.permute.xlu0 %974
  %976 = vrot.lane.b32.xlu0 %v961, 113
  %v977 = vpop.permute.xlu0 %976
  %978 = vrot.lane.b32.xlu0 %v943, 113
  %v979 = vpop.permute.xlu0 %978
  %980 = vrot.lane.b32.xlu0 %v944, 113
  %v981 = vpop.permute.xlu0 %980
  %982 = vrot.lane.b32.xlu0 %v945, 113
  %v983 = vpop.permute.xlu0 %982
  %984 = vrot.lane.b32.xlu0 %v946, 113
  %v985 = vpop.permute.xlu0 %984
  %986 = vrot.lane.b32.xlu0 %v942, 113
  %v987 = vpop.permute.xlu0 %986
  %v988 = vsel %vm229, %v969, %v971
  %v989 = vsel %vm229, %v971, %v973
  %v990 = vsel %vm229, %v973, %v975
  %v991 = vsel %vm229, %v975, %v977
  %v992 = vsel %vm229, %v979, %v981
  %v993 = vsel %vm229, %v981, %v983
  %v994 = vsel %vm229, %v983, %v985
  %v995 = vsel %vm229, %v985, %v987
  %v1001 = vsel %vm525, %v962, 0
  %v1004 = vsel %vm308, %v992, 0
  %v1007 = vsel %vm308, %v993, 0
  %v1010 = vsel %vm308, %v994, 0
  %v1013 = vsel %vm308, %v995, 0
  %1015 = vmatprep.subr.bf16.mxu0 %v989
  %1016 = vmatpush1.bf16.msra.mxu0 %v988
  %1017 = vmatprep.subr.bf16.mxu0 %v1007
  %1018 = vmatpush1.bf16.msra.mxu0 %v1004
  %1019 = vmatprep.subr.bf16.mxu0 0
  %1020 = vmatpush1.bf16.msra.mxu0 0
  %1021 = vmatprep.subr.bf16.mxu0 0
  %1022 = vmatpush1.bf16.msra.mxu0 0
  %1023 = vmatprep.subr.bf16.mxu0 0
  %1024 = vmatpush1.bf16.msra.mxu0 0
  %1025 = vmatprep.subr.bf16.mxu0 0
  %1026 = vmatpush1.bf16.msra.mxu0 0
  %1027 = vmatprep.subr.bf16.mxu0 0
  %1028 = vmatpush1.bf16.msra.mxu0 0
  %1029 = vmatprep.subr.bf16.mxu0 0
  %1030 = vmatpush1.bf16.msra.mxu0 0
  %1031 = vmatprep.subr.bf16.mxu0 0
  %1032 = vmatpush1.bf16.msra.mxu0 0
  %1033 = vmatprep.subr.bf16.mxu0 0
  %1034 = vmatpush1.bf16.msra.mxu0 0
  %1035 = vmatprep.subr.bf16.mxu0 0
  %1036 = vmatpush1.bf16.msra.mxu0 0
  %1037 = vmatprep.subr.bf16.mxu0 0
  %1038 = vmatpush1.bf16.msra.mxu0 0
  %1039 = vmatprep.subr.bf16.mxu0 0
  %1040 = vmatpush1.bf16.msra.mxu0 0
  %1041 = vmatprep.subr.bf16.mxu0 0
  %1042 = vmatpush1.bf16.msra.mxu0 0
  %1043 = vmatprep.subr.bf16.mxu0 0
  %1044 = vmatpush1.bf16.msra.mxu0 0
  %1045 = vmatprep.subr.bf16.mxu0 0
  %1046 = vmatpush1.bf16.msra.mxu0 0
  %1047 = vmatprep.mubr.bf16.mxu0 0
  %1048 = vmatmul.mubr.bf16.gmra.mrb[0].mxu0 %v1001
  %v1049 = vpop.f32.mrb[0].mxu0
  %v1050 = vadd.f32 0.0, %v1049
  %v1051 = vpop.f32.mrb[0].mxu0
  %v1052 = vadd.f32 0.0, %v1051
  %v1053 = vpop.f32.mrb[0].mxu0
  %v1054 = vpop.f32.mrb[0].mxu0
  %1055 = vdwg.mxu0
  %1056 = vmatprep.subr.bf16.mxu0 %v991
  %1057 = vmatpush1.bf16.msra.mxu0 %v990
  %1058 = vmatprep.subr.bf16.mxu0 %v1013
  %1059 = vmatpush1.bf16.msra.mxu0 %v1010
  %1060 = vmatprep.subr.bf16.mxu0 0
  %1061 = vmatpush1.bf16.msra.mxu0 0
  %1062 = vmatprep.subr.bf16.mxu0 0
  %1063 = vmatpush1.bf16.msra.mxu0 0
  %1064 = vmatprep.subr.bf16.mxu0 0
  %1065 = vmatpush1.bf16.msra.mxu0 0
  %1066 = vmatprep.subr.bf16.mxu0 0
  %1067 = vmatpush1.bf16.msra.mxu0 0
  %1068 = vmatprep.subr.bf16.mxu0 0
  %1069 = vmatpush1.bf16.msra.mxu0 0
  %1070 = vmatprep.subr.bf16.mxu0 0
  %1071 = vmatpush1.bf16.msra.mxu0 0
  %1072 = vmatprep.subr.bf16.mxu0 0
  %1073 = vmatpush1.bf16.msra.mxu0 0
  %1074 = vmatprep.subr.bf16.mxu0 0
  %1075 = vmatpush1.bf16.msra.mxu0 0
  %1076 = vmatprep.subr.bf16.mxu0 0
  %1077 = vmatpush1.bf16.msra.mxu0 0
  %1078 = vmatprep.subr.bf16.mxu0 0
  %1079 = vmatpush1.bf16.msra.mxu0 0
  %1080 = vmatprep.subr.bf16.mxu0 0
  %1081 = vmatpush1.bf16.msra.mxu0 0
  %1082 = vmatprep.subr.bf16.mxu0 0
  %1083 = vmatpush1.bf16.msra.mxu0 0
  %1084 = vmatprep.subr.bf16.mxu0 0
  %1085 = vmatpush1.bf16.msra.mxu0 0
  %1086 = vmatprep.subr.bf16.mxu0 0
  %1087 = vmatpush1.bf16.msra.mxu0 0
  %1088 = vmatprep.mubr.bf16.mxu0 0
  %1089 = vmatmul.mubr.bf16.gmra.mrb[0].mxu0 %v1001
  %v1090 = vpop.f32.mrb[0].mxu0
  %v1091 = vadd.f32 0.0, %v1090
  %v1092 = vpop.f32.mrb[0].mxu0
  %v1093 = vadd.f32 0.0, %v1092
  %v1094 = vpop.f32.mrb[0].mxu0
  %v1095 = vpop.f32.mrb[0].mxu0
  %1096 = vdwg.mxu0
  %v1097 = vadd.f32 %v711, %v1050
  %v1098 = vadd.f32 %v713, %v1052
  %v1099 = vadd.f32 %v752, %v1091
  %v1100 = vadd.f32 %v754, %v1093
  %v1101 = vld [vmem:[%s4] sm:$0xff]
  %v1102 = vld [vmem:[%s5] sm:$0xff]
  %v1103 = vadd.f32 %v1097, %v1098
  %v1104 = vadd.f32 %v1103, %v1099
  %v1105 = vadd.f32 %v1104, %v1100
  %1106 = vadd.xlane.f32.xlu0 %v1105
  %v1107 = vpop.xlane.xlu0 %1106
  %v1108 = vrcp.pop 512.0
  %v1109 = vmul.f32 %v1107, %v1108
  %v1110 = vsub.f32 %v1097, %v1109
  %v1111 = vsub.f32 %v1098, %v1109
  %v1112 = vsub.f32 %v1099, %v1109
  %v1113 = vsub.f32 %v1100, %v1109
  %v1114 = vmul.f32 %v1110, %v1110
  %v1115 = vmul.f32 %v1111, %v1111
  %v1116 = vmul.f32 %v1112, %v1112
  %v1117 = vmul.f32 %v1113, %v1113
  %v1118 = vadd.f32 %v1114, %v1115
  %v1119 = vadd.f32 %v1118, %v1116
  %v1120 = vadd.f32 %v1119, %v1117
  %1121 = vadd.xlane.f32.xlu0 %v1120
  %v1122 = vpop.xlane.xlu0 %1121
  %v1123 = vmul.f32 %v1122, %v1108
  %v1124 = vadd.f32 %v1123, 1e-05
  %v1125 = vrsqrt.pop %v1124
  %v1126 = vmul.f32 %v1101, %v1125
  %v1127 = vmul.f32 %v1109, %v1126
  %v1128 = vsub.f32 %v1102, %v1127
  %1130 = vset.pattern.permute.xlu0 0
  %1131 = vperm.xlu0 %1130, %v1126
  %v1132 = vpop.permute.xlu0 %1131
  %v1134 = vmul.f32 %v1097, %v1132
  %v1135 = vmul.f32 %v1098, %v1132
  %v1136 = vmul.f32 %v1099, %v1132
  %v1137 = vmul.f32 %v1100, %v1132
  %1139 = vset.pattern.permute.xlu0 0
  %1140 = vperm.xlu0 %1139, %v1128
  %v1141 = vpop.permute.xlu0 %1140
  %v1143 = vadd.f32 %v1134, %v1141
  %v1144 = vadd.f32 %v1135, %v1141
  %v1145 = vadd.f32 %v1136, %v1141
  %v1146 = vadd.f32 %v1137, %v1141
  %vm1147 = vcmp.ge.f32.partialorder %v1143, 0.0
  %vm1148 = vcmp.ge.f32.partialorder %v1144, 0.0
  %vm1149 = vcmp.ge.f32.partialorder %v1145, 0.0
  %vm1150 = vcmp.ge.f32.partialorder %v1146, 0.0
  %v1151 = vmul.f32 %v1143, 0.01
  %v1152 = vmul.f32 %v1144, 0.01
  %v1153 = vmul.f32 %v1145, 0.01
  %v1154 = vmul.f32 %v1146, 0.01
  %v1155 = vsel %vm1147, %v1143, %v1151
  %v1156 = vsel %vm1148, %v1144, %v1152
  %v1157 = vsel %vm1149, %v1145, %v1153
  %v1158 = vsel %vm1150, %v1146, %v1154
  %v1159 = vpack.c.bf16 %v1155, %v1155
  %v1160 = vpack.c.bf16 %v1156, %v1156
  %v1161 = vpack.c.bf16 %v1157, %v1157
  %v1162 = vpack.c.bf16 %v1158, %v1158
  %v1167 = vunpack.c.l.b16 %v1159
  %v1168 = vunpack.c.l.b16 %v1160
  %v1169 = vunpack.c.l.b16 %v1161
  %v1170 = vunpack.c.l.b16 %v1162
  %v1171 = vpack.c.b16 %v1168, %v1167
  %v1172 = vpack.c.b16 %v1170, %v1169
  %1175 = vst [vmem:[#allocation2 + $0x4] sm:$0xff] %v1171
  %1176 = vst [vmem:[#allocation2 + $0xc] sm:$0xff] %v1172
  %v1177 = vld [vmem:[#allocation2] sm:$0xff]
  %v1178 = vld [vmem:[#allocation2 + $0x8] sm:$0xff]
  %v1179 = vld [vmem:[#allocation2 + $0x10] sm:$0xf]
  %v1180 = vsel %vm151, %v1177, 0
  %v1181 = vsel %vm152, %v1178, 0
  %v1182 = vsel %vm153, %v1179, 0
  %v1183 = vsel %vm192, %v1177, 0
  %v1184 = vsel %vm193, %v1178, 0
  %v1185 = vsel %vm194, %v1179, 0
  %v1186 = vsel %vm233, %v1177, 0
  %v1187 = vsel %vm234, %v1178, 0
  %v1188 = vsel %vm235, %v1179, 0
  %v1192 = vunpack.c.l.b16 %v1180
  %v1193 = vunpack.c.h.b16 %v1180
  %v1194 = vunpack.c.l.b16 %v1181
  %v1195 = vunpack.c.h.b16 %v1181
  %v1196 = vunpack.c.l.b16 %v1182
  %v1197 = vpack.c.b16 %v1192, %v1192
  %v1198 = vpack.c.b16 %v1193, %v1193
  %v1199 = vpack.c.b16 %v1194, %v1194
  %v1200 = vpack.c.b16 %v1195, %v1195
  %v1201 = vpack.c.b16 %v1196, %v1196
  %v1205 = vunpack.c.l.b16 %v1183
  %v1206 = vunpack.c.h.b16 %v1183
  %v1207 = vunpack.c.l.b16 %v1184
  %v1208 = vunpack.c.h.b16 %v1184
  %v1209 = vunpack.c.l.b16 %v1185
  %v1210 = vpack.c.b16 %v1205, %v1205
  %v1211 = vpack.c.b16 %v1206, %v1206
  %v1212 = vpack.c.b16 %v1207, %v1207
  %v1213 = vpack.c.b16 %v1208, %v1208
  %v1214 = vpack.c.b16 %v1209, %v1209
  %1215 = vrot.lane.b32.xlu0 %v1210, 127
  %v1216 = vpop.permute.xlu0 %1215
  %1217 = vrot.lane.b32.xlu0 %v1211, 127
  %v1218 = vpop.permute.xlu0 %1217
  %1219 = vrot.lane.b32.xlu0 %v1212, 127
  %v1220 = vpop.permute.xlu0 %1219
  %1221 = vrot.lane.b32.xlu0 %v1213, 127
  %v1222 = vpop.permute.xlu0 %1221
  %1223 = vrot.lane.b32.xlu0 %v1214, 127
  %v1224 = vpop.permute.xlu0 %1223
  %v1225 = vsel %vm275, %v1216, %v1218
  %v1226 = vsel %vm275, %v1218, %v1220
  %v1227 = vsel %vm275, %v1220, %v1222
  %v1228 = vsel %vm275, %v1222, %v1224
  %v1232 = vunpack.c.l.b16 %v1186
  %v1233 = vunpack.c.h.b16 %v1186
  %v1234 = vunpack.c.l.b16 %v1187
  %v1235 = vunpack.c.h.b16 %v1187
  %v1236 = vunpack.c.l.b16 %v1188
  %v1237 = vpack.c.b16 %v1232, %v1232
  %v1238 = vpack.c.b16 %v1233, %v1233
  %v1239 = vpack.c.b16 %v1234, %v1234
  %v1240 = vpack.c.b16 %v1235, %v1235
  %v1241 = vpack.c.b16 %v1236, %v1236
  %1242 = vrot.lane.b32.xlu0 %v1237, 126
  %v1243 = vpop.permute.xlu0 %1242
  %1244 = vrot.lane.b32.xlu0 %v1238, 126
  %v1245 = vpop.permute.xlu0 %1244
  %1246 = vrot.lane.b32.xlu0 %v1239, 126
  %v1247 = vpop.permute.xlu0 %1246
  %1248 = vrot.lane.b32.xlu0 %v1240, 126
  %v1249 = vpop.permute.xlu0 %1248
  %1250 = vrot.lane.b32.xlu0 %v1241, 126
  %v1251 = vpop.permute.xlu0 %1250
  %v1252 = vsel %vm303, %v1243, %v1245
  %v1253 = vsel %vm303, %v1245, %v1247
  %v1254 = vsel %vm303, %v1247, %v1249
  %v1255 = vsel %vm303, %v1249, %v1251
  %v1258 = vsel %vm308, %v1197, %v1225
  %v1261 = vsel %vm308, %v1198, %v1226
  %v1264 = vsel %vm308, %v1199, %v1227
  %v1267 = vsel %vm308, %v1200, %v1228
  %v1270 = vsel %vm308, %v1201, %v1224
  %v1271 = vld [vmem:[%s6] sm:$0xf]
  %v1272 = vsel %vm359, %v1177, 0
  %v1273 = vsel %vm360, %v1178, 0
  %v1274 = vsel %vm361, %v1179, 0
  %v1275 = vld [vmem:[#allocation2 + $0x4] sm:$0xff]
  %v1276 = vld [vmem:[#allocation2 + $0xc] sm:$0xff]
  %v1277 = vld [vmem:[#allocation2 + $0x4] sm:$0xff]
  %v1278 = vld [vmem:[#allocation2 + $0xc] sm:$0xff]
  %v1279 = vld [vmem:[#allocation2 + $0x14] sm:$0xf]
  %v1280 = vsel %vm405, %v1277, 0
  %v1281 = vsel %vm406, %v1278, 0
  %v1282 = vsel %vm407, %v1279, 0
  %v1286 = vunpack.c.l.b16 %v1272
  %v1287 = vunpack.c.h.b16 %v1272
  %v1288 = vunpack.c.l.b16 %v1273
  %v1289 = vunpack.c.h.b16 %v1273
  %v1290 = vunpack.c.l.b16 %v1274
  %v1291 = vpack.c.b16 %v1286, %v1286
  %v1292 = vpack.c.b16 %v1287, %v1287
  %v1293 = vpack.c.b16 %v1288, %v1288
  %v1294 = vpack.c.b16 %v1289, %v1289
  %v1295 = vpack.c.b16 %v1290, %v1290
  %v1298 = vunpack.c.l.b16 %v1275
  %v1299 = vunpack.c.h.b16 %v1275
  %v1300 = vunpack.c.l.b16 %v1276
  %v1301 = vunpack.c.h.b16 %v1276
  %v1302 = vpack.c.b16 %v1298, %v1298
  %v1303 = vpack.c.b16 %v1299, %v1299
  %v1304 = vpack.c.b16 %v1300, %v1300
  %v1305 = vpack.c.b16 %v1301, %v1301
  %1306 = vrot.lane.b32.xlu0 %v1302, 127
  %v1307 = vpop.permute.xlu0 %1306
  %1308 = vrot.lane.b32.xlu0 %v1303, 127
  %v1309 = vpop.permute.xlu0 %1308
  %1310 = vrot.lane.b32.xlu0 %v1304, 127
  %v1311 = vpop.permute.xlu0 %1310
  %1312 = vrot.lane.b32.xlu0 %v1305, 127
  %v1313 = vpop.permute.xlu0 %1312
  %v1314 = vsel %vm275, %v1307, %v1309
  %v1315 = vsel %vm275, %v1309, %v1311
  %v1316 = vsel %vm275, %v1311, %v1313
  %v1320 = vunpack.c.l.b16 %v1280
  %v1321 = vunpack.c.h.b16 %v1280
  %v1322 = vunpack.c.l.b16 %v1281
  %v1323 = vunpack.c.h.b16 %v1281
  %v1324 = vunpack.c.l.b16 %v1282
  %v1325 = vpack.c.b16 %v1320, %v1320
  %v1326 = vpack.c.b16 %v1321, %v1321
  %v1327 = vpack.c.b16 %v1322, %v1322
  %v1328 = vpack.c.b16 %v1323, %v1323
  %v1329 = vpack.c.b16 %v1324, %v1324
  %1330 = vrot.lane.b32.xlu0 %v1325, 126
  %v1331 = vpop.permute.xlu0 %1330
  %1332 = vrot.lane.b32.xlu0 %v1326, 126
  %v1333 = vpop.permute.xlu0 %1332
  %1334 = vrot.lane.b32.xlu0 %v1327, 126
  %v1335 = vpop.permute.xlu0 %1334
  %1336 = vrot.lane.b32.xlu0 %v1328, 126
  %v1337 = vpop.permute.xlu0 %1336
  %1338 = vrot.lane.b32.xlu0 %v1329, 126
  %v1339 = vpop.permute.xlu0 %1338
  %v1340 = vsel %vm303, %v1331, %v1333
  %v1341 = vsel %vm303, %v1333, %v1335
  %v1342 = vsel %vm303, %v1335, %v1337
  %v1343 = vsel %vm303, %v1337, %v1339
  %v1346 = vsel %vm308, %v1291, %v1307
  %v1349 = vsel %vm308, %v1292, %v1314
  %v1352 = vsel %vm308, %v1293, %v1315
  %v1355 = vsel %vm308, %v1294, %v1316
  %v1358 = vsel %vm308, %v1295, %v1313
  %v1359 = vld [vmem:[%s6 + $0x4] sm:$0xf]
  %1365 = vrot.lane.b32.xlu0 %v1346, 1
  %v1366 = vpop.permute.xlu0 %1365
  %1367 = vrot.lane.b32.xlu0 %v1349, 1
  %v1368 = vpop.permute.xlu0 %1367
  %1369 = vrot.lane.b32.xlu0 %v1352, 1
  %v1370 = vpop.permute.xlu0 %1369
  %1371 = vrot.lane.b32.xlu0 %v1355, 1
  %v1372 = vpop.permute.xlu0 %1371
  %1373 = vrot.lane.b32.xlu0 %v1358, 1
  %v1374 = vpop.permute.xlu0 %1373
  %1375 = vrot.lane.b32.xlu0 %v1331, 1
  %v1376 = vpop.permute.xlu0 %1375
  %1377 = vrot.lane.b32.xlu0 %v1340, 1
  %v1378 = vpop.permute.xlu0 %1377
  %1379 = vrot.lane.b32.xlu0 %v1341, 1
  %v1380 = vpop.permute.xlu0 %1379
  %1381 = vrot.lane.b32.xlu0 %v1342, 1
  %v1382 = vpop.permute.xlu0 %1381
  %1383 = vrot.lane.b32.xlu0 %v1343, 1
  %v1384 = vpop.permute.xlu0 %1383
  %v1385 = vsel %vm401, %v1366, %v1368
  %v1386 = vsel %vm401, %v1368, %v1370
  %v1387 = vsel %vm401, %v1370, %v1372
  %v1388 = vsel %vm401, %v1372, %v1374
  %v1389 = vsel %vm401, %v1376, %v1378
  %v1390 = vsel %vm401, %v1378, %v1380
  %v1391 = vsel %vm401, %v1380, %v1382
  %v1392 = vsel %vm401, %v1382, %v1384
  %v1398 = vsel %vm525, %v1359, 0
  %v1401 = vsel %vm308, %v1389, 0
  %v1404 = vsel %vm308, %v1390, 0
  %v1407 = vsel %vm308, %v1391, 0
  %v1410 = vsel %vm308, %v1392, 0
  %1412 = vmatprep.subr.bf16.mxu0 %v1386
  %1413 = vmatpush1.bf16.msra.mxu0 %v1385
  %1414 = vmatprep.subr.bf16.mxu0 %v1404
  %1415 = vmatpush1.bf16.msra.mxu0 %v1401
  %1416 = vmatprep.subr.bf16.mxu0 0
  %1417 = vmatpush1.bf16.msra.mxu0 0
  %1418 = vmatprep.subr.bf16.mxu0 0
  %1419 = vmatpush1.bf16.msra.mxu0 0
  %1420 = vmatprep.subr.bf16.mxu0 0
  %1421 = vmatpush1.bf16.msra.mxu0 0
  %1422 = vmatprep.subr.bf16.mxu0 0
  %1423 = vmatpush1.bf16.msra.mxu0 0
  %1424 = vmatprep.subr.bf16.mxu0 0
  %1425 = vmatpush1.bf16.msra.mxu0 0
  %1426 = vmatprep.subr.bf16.mxu0 0
  %1427 = vmatpush1.bf16.msra.mxu0 0
  %1428 = vmatprep.subr.bf16.mxu0 0
  %1429 = vmatpush1.bf16.msra.mxu0 0
  %1430 = vmatprep.subr.bf16.mxu0 0
  %1431 = vmatpush1.bf16.msra.mxu0 0
  %1432 = vmatprep.subr.bf16.mxu0 0
  %1433 = vmatpush1.bf16.msra.mxu0 0
  %1434 = vmatprep.subr.bf16.mxu0 0
  %1435 = vmatpush1.bf16.msra.mxu0 0
  %1436 = vmatprep.subr.bf16.mxu0 0
  %1437 = vmatpush1.bf16.msra.mxu0 0
  %1438 = vmatprep.subr.bf16.mxu0 0
  %1439 = vmatpush1.bf16.msra.mxu0 0
  %1440 = vmatprep.subr.bf16.mxu0 0
  %1441 = vmatpush1.bf16.msra.mxu0 0
  %1442 = vmatprep.subr.bf16.mxu0 0
  %1443 = vmatpush1.bf16.msra.mxu0 0
  %1444 = vmatprep.mubr.bf16.mxu0 0
  %1445 = vmatmul.mubr.bf16.gmra.mrb[0].mxu0 %v1398
  %v1446 = vpop.f32.mrb[0].mxu0
  %v1447 = vadd.f32 0.0, %v1446
  %v1448 = vpop.f32.mrb[0].mxu0
  %v1449 = vadd.f32 0.0, %v1448
  %v1450 = vpop.f32.mrb[0].mxu0
  %v1451 = vpop.f32.mrb[0].mxu0
  %1452 = vdwg.mxu0
  %1453 = vmatprep.subr.bf16.mxu0 %v1388
  %1454 = vmatpush1.bf16.msra.mxu0 %v1387
  %1455 = vmatprep.subr.bf16.mxu0 %v1410
  %1456 = vmatpush1.bf16.msra.mxu0 %v1407
  %1457 = vmatprep.subr.bf16.mxu0 0
  %1458 = vmatpush1.bf16.msra.mxu0 0
  %1459 = vmatprep.subr.bf16.mxu0 0
  %1460 = vmatpush1.bf16.msra.mxu0 0
  %1461 = vmatprep.subr.bf16.mxu0 0
  %1462 = vmatpush1.bf16.msra.mxu0 0
  %1463 = vmatprep.subr.bf16.mxu0 0
  %1464 = vmatpush1.bf16.msra.mxu0 0
  %1465 = vmatprep.subr.bf16.mxu0 0
  %1466 = vmatpush1.bf16.msra.mxu0 0
  %1467 = vmatprep.subr.bf16.mxu0 0
  %1468 = vmatpush1.bf16.msra.mxu0 0
  %1469 = vmatprep.subr.bf16.mxu0 0
  %1470 = vmatpush1.bf16.msra.mxu0 0
  %1471 = vmatprep.subr.bf16.mxu0 0
  %1472 = vmatpush1.bf16.msra.mxu0 0
  %1473 = vmatprep.subr.bf16.mxu0 0
  %1474 = vmatpush1.bf16.msra.mxu0 0
  %1475 = vmatprep.subr.bf16.mxu0 0
  %1476 = vmatpush1.bf16.msra.mxu0 0
  %1477 = vmatprep.subr.bf16.mxu0 0
  %1478 = vmatpush1.bf16.msra.mxu0 0
  %1479 = vmatprep.subr.bf16.mxu0 0
  %1480 = vmatpush1.bf16.msra.mxu0 0
  %1481 = vmatprep.subr.bf16.mxu0 0
  %1482 = vmatpush1.bf16.msra.mxu0 0
  %1483 = vmatprep.subr.bf16.mxu0 0
  %1484 = vmatpush1.bf16.msra.mxu0 0
  %1485 = vmatprep.mubr.bf16.mxu0 0
  %1486 = vmatmul.mubr.bf16.gmra.mrb[0].mxu0 %v1398
  %v1487 = vpop.f32.mrb[0].mxu0
  %v1488 = vadd.f32 0.0, %v1487
  %v1489 = vpop.f32.mrb[0].mxu0
  %v1490 = vadd.f32 0.0, %v1489
  %v1491 = vpop.f32.mrb[0].mxu0
  %v1492 = vpop.f32.mrb[0].mxu0
  %1493 = vdwg.mxu0
  %1499 = vrot.lane.b32.xlu0 %v1258, 17
  %v1500 = vpop.permute.xlu0 %1499
  %1501 = vrot.lane.b32.xlu0 %v1261, 17
  %v1502 = vpop.permute.xlu0 %1501
  %1503 = vrot.lane.b32.xlu0 %v1264, 17
  %v1504 = vpop.permute.xlu0 %1503
  %1505 = vrot.lane.b32.xlu0 %v1267, 17
  %v1506 = vpop.permute.xlu0 %1505
  %1507 = vrot.lane.b32.xlu0 %v1270, 17
  %v1508 = vpop.permute.xlu0 %1507
  %1509 = vrot.lane.b32.xlu0 %v1252, 17
  %v1510 = vpop.permute.xlu0 %1509
  %1511 = vrot.lane.b32.xlu0 %v1253, 17
  %v1512 = vpop.permute.xlu0 %1511
  %1513 = vrot.lane.b32.xlu0 %v1254, 17
  %v1514 = vpop.permute.xlu0 %1513
  %1515 = vrot.lane.b32.xlu0 %v1255, 17
  %v1516 = vpop.permute.xlu0 %1515
  %1517 = vrot.lane.b32.xlu0 %v1251, 17
  %v1518 = vpop.permute.xlu0 %1517
  %v1519 = vsel %vm648, %v1500, %v1502
  %v1520 = vsel %vm648, %v1502, %v1504
  %v1521 = vsel %vm648, %v1504, %v1506
  %v1522 = vsel %vm648, %v1506, %v1508
  %v1523 = vsel %vm648, %v1510, %v1512
  %v1524 = vsel %vm648, %v1512, %v1514
  %v1525 = vsel %vm648, %v1514, %v1516
  %v1526 = vsel %vm648, %v1516, %v1518
  %v1532 = vsel %vm525, %v1271, 0
  %v1535 = vsel %vm308, %v1523, 0
  %v1538 = vsel %vm308, %v1524, 0
  %v1541 = vsel %vm308, %v1525, 0
  %v1544 = vsel %vm308, %v1526, 0
  %1546 = vmatprep.subr.bf16.mxu0 %v1520
  %1547 = vmatpush1.bf16.msra.mxu0 %v1519
  %1548 = vmatprep.subr.bf16.mxu0 %v1538
  %1549 = vmatpush1.bf16.msra.mxu0 %v1535
  %1550 = vmatprep.subr.bf16.mxu0 0
  %1551 = vmatpush1.bf16.msra.mxu0 0
  %1552 = vmatprep.subr.bf16.mxu0 0
  %1553 = vmatpush1.bf16.msra.mxu0 0
  %1554 = vmatprep.subr.bf16.mxu0 0
  %1555 = vmatpush1.bf16.msra.mxu0 0
  %1556 = vmatprep.subr.bf16.mxu0 0
  %1557 = vmatpush1.bf16.msra.mxu0 0
  %1558 = vmatprep.subr.bf16.mxu0 0
  %1559 = vmatpush1.bf16.msra.mxu0 0
  %1560 = vmatprep.subr.bf16.mxu0 0
  %1561 = vmatpush1.bf16.msra.mxu0 0
  %1562 = vmatprep.subr.bf16.mxu0 0
  %1563 = vmatpush1.bf16.msra.mxu0 0
  %1564 = vmatprep.subr.bf16.mxu0 0
  %1565 = vmatpush1.bf16.msra.mxu0 0
  %1566 = vmatprep.subr.bf16.mxu0 0
  %1567 = vmatpush1.bf16.msra.mxu0 0
  %1568 = vmatprep.subr.bf16.mxu0 0
  %1569 = vmatpush1.bf16.msra.mxu0 0
  %1570 = vmatprep.subr.bf16.mxu0 0
  %1571 = vmatpush1.bf16.msra.mxu0 0
  %1572 = vmatprep.subr.bf16.mxu0 0
  %1573 = vmatpush1.bf16.msra.mxu0 0
  %1574 = vmatprep.subr.bf16.mxu0 0
  %1575 = vmatpush1.bf16.msra.mxu0 0
  %1576 = vmatprep.subr.bf16.mxu0 0
  %1577 = vmatpush1.bf16.msra.mxu0 0
  %1578 = vmatprep.mubr.bf16.mxu0 0
  %1579 = vmatmul.mubr.bf16.gmra.mrb[0].mxu0 %v1532
  %v1580 = vpop.f32.mrb[0].mxu0
  %v1581 = vadd.f32 %v1447, %v1580
  %v1582 = vpop.f32.mrb[0].mxu0
  %v1583 = vadd.f32 %v1449, %v1582
  %v1584 = vpop.f32.mrb[0].mxu0
  %v1585 = vpop.f32.mrb[0].mxu0
  %1586 = vdwg.mxu0
  %1587 = vmatprep.subr.bf16.mxu0 %v1522
  %1588 = vmatpush1.bf16.msra.mxu0 %v1521
  %1589 = vmatprep.subr.bf16.mxu0 %v1544
  %1590 = vmatpush1.bf16.msra.mxu0 %v1541
  %1591 = vmatprep.subr.bf16.mxu0 0
  %1592 = vmatpush1.bf16.msra.mxu0 0
  %1593 = vmatprep.subr.bf16.mxu0 0
  %1594 = vmatpush1.bf16.msra.mxu0 0
  %1595 = vmatprep.subr.bf16.mxu0 0
  %1596 = vmatpush1.bf16.msra.mxu0 0
  %1597 = vmatprep.subr.bf16.mxu0 0
  %1598 = vmatpush1.bf16.msra.mxu0 0
  %1599 = vmatprep.subr.bf16.mxu0 0
  %1600 = vmatpush1.bf16.msra.mxu0 0
  %1601 = vmatprep.subr.bf16.mxu0 0
  %1602 = vmatpush1.bf16.msra.mxu0 0
  %1603 = vmatprep.subr.bf16.mxu0 0
  %1604 = vmatpush1.bf16.msra.mxu0 0
  %1605 = vmatprep.subr.bf16.mxu0 0
  %1606 = vmatpush1.bf16.msra.mxu0 0
  %1607 = vmatprep.subr.bf16.mxu0 0
  %1608 = vmatpush1.bf16.msra.mxu0 0
  %1609 = vmatprep.subr.bf16.mxu0 0
  %1610 = vmatpush1.bf16.msra.mxu0 0
  %1611 = vmatprep.subr.bf16.mxu0 0
  %1612 = vmatpush1.bf16.msra.mxu0 0
  %1613 = vmatprep.subr.bf16.mxu0 0
  %1614 = vmatpush1.bf16.msra.mxu0 0
  %1615 = vmatprep.subr.bf16.mxu0 0
  %1616 = vmatpush1.bf16.msra.mxu0 0
  %1617 = vmatprep.subr.bf16.mxu0 0
  %1618 = vmatpush1.bf16.msra.mxu0 0
  %1619 = vmatprep.mubr.bf16.mxu0 0
  %1620 = vmatmul.mubr.bf16.gmra.mrb[0].mxu0 %v1532
  %v1621 = vpop.f32.mrb[0].mxu0
  %v1622 = vadd.f32 %v1488, %v1621
  %v1623 = vpop.f32.mrb[0].mxu0
  %v1624 = vadd.f32 %v1490, %v1623
  %v1625 = vpop.f32.mrb[0].mxu0
  %v1626 = vpop.f32.mrb[0].mxu0
  %1627 = vdwg.mxu0
  %v1628 = vsel %vm793, %v1277, 0
  %v1629 = vsel %vm794, %v1278, 0
  %v1630 = vsel %vm795, %v1279, 0
  %v1631 = vsel %vm834, %v1277, 0
  %v1632 = vsel %vm835, %v1278, 0
  %v1633 = vsel %vm836, %v1279, 0
  %v1634 = vsel %vm874, %v1277, 0
  %v1635 = vsel %vm875, %v1278, 0
  %v1636 = vsel %vm876, %v1279, 0
  %v1640 = vunpack.c.l.b16 %v1628
  %v1641 = vunpack.c.h.b16 %v1628
  %v1642 = vunpack.c.l.b16 %v1629
  %v1643 = vunpack.c.h.b16 %v1629
  %v1644 = vunpack.c.l.b16 %v1630
  %v1645 = vpack.c.b16 %v1640, %v1640
  %v1646 = vpack.c.b16 %v1641, %v1641
  %v1647 = vpack.c.b16 %v1642, %v1642
  %v1648 = vpack.c.b16 %v1643, %v1643
  %v1649 = vpack.c.b16 %v1644, %v1644
  %v1653 = vunpack.c.l.b16 %v1631
  %v1654 = vunpack.c.h.b16 %v1631
  %v1655 = vunpack.c.l.b16 %v1632
  %v1656 = vunpack.c.h.b16 %v1632
  %v1657 = vunpack.c.l.b16 %v1633
  %v1658 = vpack.c.b16 %v1653, %v1653
  %v1659 = vpack.c.b16 %v1654, %v1654
  %v1660 = vpack.c.b16 %v1655, %v1655
  %v1661 = vpack.c.b16 %v1656, %v1656
  %v1662 = vpack.c.b16 %v1657, %v1657
  %1663 = vrot.lane.b32.xlu0 %v1658, 127
  %v1664 = vpop.permute.xlu0 %1663
  %1665 = vrot.lane.b32.xlu0 %v1659, 127
  %v1666 = vpop.permute.xlu0 %1665
  %1667 = vrot.lane.b32.xlu0 %v1660, 127
  %v1668 = vpop.permute.xlu0 %1667
  %1669 = vrot.lane.b32.xlu0 %v1661, 127
  %v1670 = vpop.permute.xlu0 %1669
  %1671 = vrot.lane.b32.xlu0 %v1662, 127
  %v1672 = vpop.permute.xlu0 %1671
  %v1673 = vsel %vm275, %v1664, %v1666
  %v1674 = vsel %vm275, %v1666, %v1668
  %v1675 = vsel %vm275, %v1668, %v1670
  %v1676 = vsel %vm275, %v1670, %v1672
  %v1680 = vunpack.c.l.b16 %v1634
  %v1681 = vunpack.c.h.b16 %v1634
  %v1682 = vunpack.c.l.b16 %v1635
  %v1683 = vunpack.c.h.b16 %v1635
  %v1684 = vunpack.c.l.b16 %v1636
  %v1685 = vpack.c.b16 %v1680, %v1680
  %v1686 = vpack.c.b16 %v1681, %v1681
  %v1687 = vpack.c.b16 %v1682, %v1682
  %v1688 = vpack.c.b16 %v1683, %v1683
  %v1689 = vpack.c.b16 %v1684, %v1684
  %1690 = vrot.lane.b32.xlu0 %v1685, 126
  %v1691 = vpop.permute.xlu0 %1690
  %1692 = vrot.lane.b32.xlu0 %v1686, 126
  %v1693 = vpop.permute.xlu0 %1692
  %1694 = vrot.lane.b32.xlu0 %v1687, 126
  %v1695 = vpop.permute.xlu0 %1694
  %1696 = vrot.lane.b32.xlu0 %v1688, 126
  %v1697 = vpop.permute.xlu0 %1696
  %1698 = vrot.lane.b32.xlu0 %v1689, 126
  %v1699 = vpop.permute.xlu0 %1698
  %v1700 = vsel %vm303, %v1691, %v1693
  %v1701 = vsel %vm303, %v1693, %v1695
  %v1702 = vsel %vm303, %v1695, %v1697
  %v1703 = vsel %vm303, %v1697, %v1699
  %v1706 = vsel %vm308, %v1645, %v1673
  %v1709 = vsel %vm308, %v1646, %v1674
  %v1712 = vsel %vm308, %v1647, %v1675
  %v1715 = vsel %vm308, %v1648, %v1676
  %v1718 = vsel %vm308, %v1649, %v1672
  %v1719 = vld [vmem:[%s6 + $0x8] sm:$0xf]
  %1725 = vrot.lane.b32.xlu0 %v1706, 113
  %v1726 = vpop.permute.xlu0 %1725
  %1727 = vrot.lane.b32.xlu0 %v1709, 113
  %v1728 = vpop.permute.xlu0 %1727
  %1729 = vrot.lane.b32.xlu0 %v1712, 113
  %v1730 = vpop.permute.xlu0 %1729
  %1731 = vrot.lane.b32.xlu0 %v1715, 113
  %v1732 = vpop.permute.xlu0 %1731
  %1733 = vrot.lane.b32.xlu0 %v1718, 113
  %v1734 = vpop.permute.xlu0 %1733
  %1735 = vrot.lane.b32.xlu0 %v1700, 113
  %v1736 = vpop.permute.xlu0 %1735
  %1737 = vrot.lane.b32.xlu0 %v1701, 113
  %v1738 = vpop.permute.xlu0 %1737
  %1739 = vrot.lane.b32.xlu0 %v1702, 113
  %v1740 = vpop.permute.xlu0 %1739
  %1741 = vrot.lane.b32.xlu0 %v1703, 113
  %v1742 = vpop.permute.xlu0 %1741
  %1743 = vrot.lane.b32.xlu0 %v1699, 113
  %v1744 = vpop.permute.xlu0 %1743
  %v1745 = vsel %vm229, %v1726, %v1728
  %v1746 = vsel %vm229, %v1728, %v1730
  %v1747 = vsel %vm229, %v1730, %v1732
  %v1748 = vsel %vm229, %v1732, %v1734
  %v1749 = vsel %vm229, %v1736, %v1738
  %v1750 = vsel %vm229, %v1738, %v1740
  %v1751 = vsel %vm229, %v1740, %v1742
  %v1752 = vsel %vm229, %v1742, %v1744
  %v1758 = vsel %vm525, %v1719, 0
  %v1761 = vsel %vm308, %v1749, 0
  %v1764 = vsel %vm308, %v1750, 0
  %v1767 = vsel %vm308, %v1751, 0
  %v1770 = vsel %vm308, %v1752, 0
  %1772 = vmatprep.subr.bf16.mxu0 %v1746
  %1773 = vmatpush1.bf16.msra.mxu0 %v1745
  %1774 = vmatprep.subr.bf16.mxu0 %v1764
  %1775 = vmatpush1.bf16.msra.mxu0 %v1761
  %1776 = vmatprep.subr.bf16.mxu0 0
  %1777 = vmatpush1.bf16.msra.mxu0 0
  %1778 = vmatprep.subr.bf16.mxu0 0
  %1779 = vmatpush1.bf16.msra.mxu0 0
  %1780 = vmatprep.subr.bf16.mxu0 0
  %1781 = vmatpush1.bf16.msra.mxu0 0
  %1782 = vmatprep.subr.bf16.mxu0 0
  %1783 = vmatpush1.bf16.msra.mxu0 0
  %1784 = vmatprep.subr.bf16.mxu0 0
  %1785 = vmatpush1.bf16.msra.mxu0 0
  %1786 = vmatprep.subr.bf16.mxu0 0
  %1787 = vmatpush1.bf16.msra.mxu0 0
  %1788 = vmatprep.subr.bf16.mxu0 0
  %1789 = vmatpush1.bf16.msra.mxu0 0
  %1790 = vmatprep.subr.bf16.mxu0 0
  %1791 = vmatpush1.bf16.msra.mxu0 0
  %1792 = vmatprep.subr.bf16.mxu0 0
  %1793 = vmatpush1.bf16.msra.mxu0 0
  %1794 = vmatprep.subr.bf16.mxu0 0
  %1795 = vmatpush1.bf16.msra.mxu0 0
  %1796 = vmatprep.subr.bf16.mxu0 0
  %1797 = vmatpush1.bf16.msra.mxu0 0
  %1798 = vmatprep.subr.bf16.mxu0 0
  %1799 = vmatpush1.bf16.msra.mxu0 0
  %1800 = vmatprep.subr.bf16.mxu0 0
  %1801 = vmatpush1.bf16.msra.mxu0 0
  %1802 = vmatprep.subr.bf16.mxu0 0
  %1803 = vmatpush1.bf16.msra.mxu0 0
  %1804 = vmatprep.mubr.bf16.mxu0 0
  %1805 = vmatmul.mubr.bf16.gmra.mrb[0].mxu0 %v1758
  %v1806 = vpop.f32.mrb[0].mxu0
  %v1807 = vadd.f32 0.0, %v1806
  %v1808 = vpop.f32.mrb[0].mxu0
  %v1809 = vadd.f32 0.0, %v1808
  %v1810 = vpop.f32.mrb[0].mxu0
  %v1811 = vpop.f32.mrb[0].mxu0
  %1812 = vdwg.mxu0
  %1813 = vmatprep.subr.bf16.mxu0 %v1748
  %1814 = vmatpush1.bf16.msra.mxu0 %v1747
  %1815 = vmatprep.subr.bf16.mxu0 %v1770
  %1816 = vmatpush1.bf16.msra.mxu0 %v1767
  %1817 = vmatprep.subr.bf16.mxu0 0
  %1818 = vmatpush1.bf16.msra.mxu0 0
  %1819 = vmatprep.subr.bf16.mxu0 0
  %1820 = vmatpush1.bf16.msra.mxu0 0
  %1821 = vmatprep.subr.bf16.mxu0 0
  %1822 = vmatpush1.bf16.msra.mxu0 0
  %1823 = vmatprep.subr.bf16.mxu0 0
  %1824 = vmatpush1.bf16.msra.mxu0 0
  %1825 = vmatprep.subr.bf16.mxu0 0
  %1826 = vmatpush1.bf16.msra.mxu0 0
  %1827 = vmatprep.subr.bf16.mxu0 0
  %1828 = vmatpush1.bf16.msra.mxu0 0
  %1829 = vmatprep.subr.bf16.mxu0 0
  %1830 = vmatpush1.bf16.msra.mxu0 0
  %1831 = vmatprep.subr.bf16.mxu0 0
  %1832 = vmatpush1.bf16.msra.mxu0 0
  %1833 = vmatprep.subr.bf16.mxu0 0
  %1834 = vmatpush1.bf16.msra.mxu0 0
  %1835 = vmatprep.subr.bf16.mxu0 0
  %1836 = vmatpush1.bf16.msra.mxu0 0
  %1837 = vmatprep.subr.bf16.mxu0 0
  %1838 = vmatpush1.bf16.msra.mxu0 0
  %1839 = vmatprep.subr.bf16.mxu0 0
  %1840 = vmatpush1.bf16.msra.mxu0 0
  %1841 = vmatprep.subr.bf16.mxu0 0
  %1842 = vmatpush1.bf16.msra.mxu0 0
  %1843 = vmatprep.subr.bf16.mxu0 0
  %1844 = vmatpush1.bf16.msra.mxu0 0
  %1845 = vmatprep.mubr.bf16.mxu0 0
  %1846 = vmatmul.mubr.bf16.gmra.mrb[0].mxu0 %v1758
  %v1847 = vpop.f32.mrb[0].mxu0
  %v1848 = vadd.f32 0.0, %v1847
  %v1849 = vpop.f32.mrb[0].mxu0
  %v1850 = vadd.f32 0.0, %v1849
  %v1851 = vpop.f32.mrb[0].mxu0
  %v1852 = vpop.f32.mrb[0].mxu0
  %1853 = vdwg.mxu0
  %v1854 = vadd.f32 %v1581, %v1807
  %v1855 = vadd.f32 %v1583, %v1809
  %v1856 = vadd.f32 %v1622, %v1848
  %v1857 = vadd.f32 %v1624, %v1850
  %v1858 = vld [vmem:[%s7] sm:$0xff]
  %v1859 = vld [vmem:[%s8] sm:$0xff]
  %v1860 = vadd.f32 %v1854, %v1855
  %v1861 = vadd.f32 %v1860, %v1856
  %v1862 = vadd.f32 %v1861, %v1857
  %1863 = vadd.xlane.f32.xlu0 %v1862
  %v1864 = vpop.xlane.xlu0 %1863
  %v1865 = vmul.f32 %v1864, %v1108
  %v1866 = vsub.f32 %v1854, %v1865
  %v1867 = vsub.f32 %v1855, %v1865
  %v1868 = vsub.f32 %v1856, %v1865
  %v1869 = vsub.f32 %v1857, %v1865
  %v1870 = vmul.f32 %v1866, %v1866
  %v1871 = vmul.f32 %v1867, %v1867
  %v1872 = vmul.f32 %v1868, %v1868
  %v1873 = vmul.f32 %v1869, %v1869
  %v1874 = vadd.f32 %v1870, %v1871
  %v1875 = vadd.f32 %v1874, %v1872
  %v1876 = vadd.f32 %v1875, %v1873
  %1877 = vadd.xlane.f32.xlu0 %v1876
  %v1878 = vpop.xlane.xlu0 %1877
  %v1879 = vmul.f32 %v1878, %v1108
  %v1880 = vadd.f32 %v1879, 1e-05
  %v1881 = vrsqrt.pop %v1880
  %v1882 = vmul.f32 %v1858, %v1881
  %v1883 = vmul.f32 %v1865, %v1882
  %v1884 = vsub.f32 %v1859, %v1883
  %1886 = vset.pattern.permute.xlu0 0
  %1887 = vperm.xlu0 %1886, %v1882
  %v1888 = vpop.permute.xlu0 %1887
  %v1890 = vmul.f32 %v1854, %v1888
  %v1891 = vmul.f32 %v1855, %v1888
  %v1892 = vmul.f32 %v1856, %v1888
  %v1893 = vmul.f32 %v1857, %v1888
  %1895 = vset.pattern.permute.xlu0 0
  %1896 = vperm.xlu0 %1895, %v1884
  %v1897 = vpop.permute.xlu0 %1896
  %v1899 = vadd.f32 %v1890, %v1897
  %v1900 = vadd.f32 %v1891, %v1897
  %v1901 = vadd.f32 %v1892, %v1897
  %v1902 = vadd.f32 %v1893, %v1897
  %vm1903 = vcmp.ge.f32.partialorder %v1899, 0.0
  %vm1904 = vcmp.ge.f32.partialorder %v1900, 0.0
  %vm1905 = vcmp.ge.f32.partialorder %v1901, 0.0
  %vm1906 = vcmp.ge.f32.partialorder %v1902, 0.0
  %v1907 = vmul.f32 %v1899, 0.01
  %v1908 = vmul.f32 %v1900, 0.01
  %v1909 = vmul.f32 %v1901, 0.01
  %v1910 = vmul.f32 %v1902, 0.01
  %v1911 = vsel %vm1903, %v1899, %v1907
  %v1912 = vsel %vm1904, %v1900, %v1908
  %v1913 = vsel %vm1905, %v1901, %v1909
  %v1914 = vsel %vm1906, %v1902, %v1910
  %1915 = vst [vmem:[%s9] sm:$0xff] %v1911
  %1916 = vst [vmem:[%s9 + $0x8] sm:$0xff] %v1912
  %1917 = vst [vmem:[%s9 + $0x10] sm:$0xff] %v1913
  %1918 = vst [vmem:[%s9 + $0x18] sm:$0xff] %v1914
  // Predicated region
  $region38: #{up_data1.1} parent=0 // pred_check
    _
  $region39: #{up_data1.1} parent=0 // pred_check_branch
    %1920 = sbr.rel (0) target = $region41
  $region40: #{up_data1.1} parent=0 // pred_region
    _
  $region41: #{up_data1.1} parent=0 // pred_fallthru
    _
  // Predicated region
  $region42: #{up_data1.1} parent=0 // pred_check
    _
  $region43: #{up_data1.1} parent=0 // pred_check_branch
    %1922 = sbr.rel (0) target = $region45
  $region44: #{up_data1.1} parent=0 // pred_region
    _
  $region45: #{up_data1.1} parent=0 // pred_fallthru
    _

</llo_original>
